<compile_context>
chip_gen: v7x
topology: tpu7x:2x2x1
jax: 0.10.0
libtpu: 0.0.40
codegen_flags: <defaults>
</compile_context>

<pallas_src>
import functools

import jax
import jax.numpy as jnp
from jax import lax
from jax.experimental import pallas as pl
from jax.experimental.pallas import tpu as pltpu

F32 = jnp.float32
BF16 = jnp.bfloat16


def _vmem():
    return pl.BlockSpec(memory_space=pltpu.MemorySpace.VMEM)


# ----------------------------------------------------------------------------
# The single fused kernel
# ----------------------------------------------------------------------------
def han_fused_kernel(*refs, num_feats, mp_edge_flags, hid, num_blocks, each_dnn):
    out_ref = refs[-1]
    it = iter(refs[:-1])
    nxt = lambda: next(it)

    def mm(x, w):
        # MXU matmul: bf16 operands, f32 accumulation.
        return jnp.dot(x.astype(BF16), w, preferred_element_type=F32)

    def layer_norm(y, g, beta):
        mu = jnp.mean(y, axis=-1, keepdims=True)
        var = jnp.mean(jnp.square(y - mu), axis=-1, keepdims=True)
        return (y - mu) * lax.rsqrt(var + 1e-5) * g + beta

    # ---- per-node-type feature transforms -----------------------------------
    feats = []
    for _ in range(num_feats):
        x_ref, w_ref, b_ref = nxt(), nxt(), nxt()
        feats.append(mm(x_ref[...], w_ref[...]) + b_ref[...])

    src_h = feats[0]
    n_src = src_h.shape[0]

    # ---- per-metapath GATConv ------------------------------------------------
    # TODO(synk): h_dropout / GAT dropout are identity (inference mode).
    outputs = [src_h]
    for fi, has_edges in enumerate(mp_edge_flags):
        if not has_edges:
            outputs.append(jnp.zeros_like(src_h))
            continue
        edges_ref = nxt()                                   # (2, E) int32
        fwa_ref, fba_ref = nxt(), nxt()                     # (F, H+1) bf16, (1, H+1)
        w2_ref, ab_ref, bias_ref = nxt(), nxt(), nxt()      # (1, H) bf16, (1,1), (1,H)

        tgt_x = feats[1 + fi]
        n_tgt = tgt_x.shape[0]

        # feat_linear with the source attention projection folded in as the
        # last output column: [:, :H] = feat_linear(h), [:, H] = feat_linear(h)@a_src
        sh_aug = mm(src_h, fwa_ref[...]) + fba_ref[...]     # (Ns, H+1)
        th_aug = mm(tgt_x, fwa_ref[...]) + fba_ref[...]     # (Nt, H+1)
        th = th_aug[:, :hid]                                # transformed targets
        s1 = sh_aug[:, hid:hid + 1]                         # (Ns, 1)
        # target attention projection as a row: (1, H) . (Nt, H)^T -> (1, Nt)
        t2 = lax.dot_general(w2_ref[...], th.astype(BF16),
                             (((1,), (1,)), ((), ())),
                             preferred_element_type=F32)
        e = jnp.tanh(s1 + t2 + ab_ref[...])                 # (Ns, Nt) attention logits

        # Edge mask built in-kernel from the edge list (no XLA scatter, no dense
        # f32 mask through HBM): cnt[i,j] = #edges (i -> j).
        n_e = edges_ref.shape[1]
        e_src = edges_ref[0:1, :]                           # (1, E)
        e_tgt = edges_ref[1:2, :]                           # (1, E)
        row_hit = (lax.broadcasted_iota(jnp.int32, (n_src, n_e), 0) == e_src)
        col_hit = (lax.broadcasted_iota(jnp.int32, (n_tgt, n_e), 0) == e_tgt)
        cnt = lax.dot_general(row_hit.astype(F32), col_hit.astype(F32),
                              (((1,), (1,)), ((), ())),
                              preferred_element_type=F32)   # (Ns, Nt)
        mask = cnt > 0.5

        # sparse.softmax(dim=1) over present edges; rows with no edges -> all-zero
        # attention (output = bias), matching sparse-softmax-on-empty-row.
        e_m = jnp.where(mask, e, -1e30)
        m = jnp.max(e_m, axis=1, keepdims=True)
        p = jnp.where(mask, jnp.exp(e_m - m), 0.0)
        denom = jnp.sum(p, axis=1, keepdims=True)
        denom = jnp.where(denom > 0.0, denom, 1.0)
        attn = p * pl.reciprocal(denom, approx=True)

        h_mp = mm(attn, th.astype(BF16)) + bias_ref[...]    # spmm + bias
        outputs.append(h_mp)

    # ---- semantic (meta-path level) attention --------------------------------
    wsel_ref, semb_ref = nxt(), nxt()
    num_paths = len(outputs)
    big = jnp.concatenate(outputs, axis=1)                  # (N, P*H)
    # single contraction against a block-diagonal selector built from sem_w
    logits = mm(big, wsel_ref[...]) + semb_ref[...]         # (N, P)
    logits = jnp.where(logits >= 0.0, logits, 0.01 * logits)  # leaky_relu
    lm = jnp.max(logits, axis=1, keepdims=True)
    pexp = jnp.exp(logits - lm)
    psum = jnp.sum(pexp, axis=1, keepdims=True)
    sattn = pexp * pl.reciprocal(psum, approx=True)         # (N, P) softmax over paths
    h = jnp.zeros_like(src_h)
    for pth in range(num_paths):                            # P tiny VPU mul-adds
        h = h + sattn[:, pth:pth + 1] * outputs[pth]

    # ---- base_Res_DNN: prepare -> res blocks -> classifier -> sigmoid --------
    prepw_ref, prepb_ref = nxt(), nxt()
    dnnw_ref, dnnb_ref, dnng_ref, dnnbeta_ref = nxt(), nxt(), nxt(), nxt()
    blkg_ref, blkbeta_ref = nxt(), nxt()
    clsw_ref, clsb_ref = nxt(), nxt()

    h = mm(h, prepw_ref[...]) + prepb_ref[...]
    li = 0
    for blk in range(num_blocks):
        shortcut = h
        for _ in range(each_dnn):
            # TODO(synk): DNN dropout is identity (inference mode).
            y = mm(h, dnnw_ref[li]) + dnnb_ref[li]
            h = layer_norm(jnp.tanh(y), dnng_ref[li], dnnbeta_ref[li])
            li += 1
        h = layer_norm(jnp.tanh(shortcut + h), blkg_ref[blk], blkbeta_ref[blk])

    y = mm(h, clsw_ref[...]) + clsb_ref[...]                # (N, 1)
    out_ref[...] = 1.0 / (1.0 + jnp.exp(-y))                # sigmoid


# ----------------------------------------------------------------------------
# Parameter construction (deterministic, PyTorch-like uniform init)
# ----------------------------------------------------------------------------
def _init_linear(key, fan_in, fan_out):
    kw, kb = jax.random.split(key)
    bound = 1.0 / jnp.sqrt(jnp.float32(fan_in))
    w = jax.random.uniform(kw, (fan_in, fan_out), F32, -bound, bound)
    b = jax.random.uniform(kb, (1, fan_out), F32, -bound, bound)
    return w, b


def make_han_params(key, node_type_to_feature_len, all_meta_path_list,
                    node_feature_hid_len, metapath_level_nhid,
                    num_res_dnn, each_res_dnn_num):
    keys = iter(jax.random.split(key, 64))
    params = {}

    params['node_transform'] = {
        t: _init_linear(next(keys), f, node_feature_hid_len)
        for t, f in node_type_to_feature_len.items()
    }

    params['edge_gat'] = {}
    for mp in all_meta_path_list:
        fw, fb = _init_linear(next(keys), node_feature_hid_len, metapath_level_nhid)
        aw, ab = _init_linear(next(keys), 2 * metapath_level_nhid, 1)
        params['edge_gat'][mp] = dict(
            fw=fw, fb=fb,
            w1=aw[:metapath_level_nhid, :],                      # (H, 1) source part
            w2=aw[metapath_level_nhid:, :].reshape(1, -1),       # (1, H) target part
            ab=ab.reshape(1, 1),
            bias=jnp.zeros((1, metapath_level_nhid), F32),       # reset_parameters
        )

    sw, sb = _init_linear(next(keys), metapath_level_nhid, 1)
    params['sem_w'] = sw                        # (H, 1)
    params['sem_b'] = sb.reshape(1, 1)

    params['prepare'] = _init_linear(next(keys), metapath_level_nhid, metapath_level_nhid)

    params['res_blocks'] = []
    for _ in range(num_res_dnn):
        dnn_layers = []
        for _ in range(each_res_dnn_num):
            w, b = _init_linear(next(keys), metapath_level_nhid, metapath_level_nhid)
            g = jnp.ones((1, metapath_level_nhid), F32)
            beta = jnp.zeros((1, metapath_level_nhid), F32)
            dnn_layers.append((w, b, g, beta))
        params['res_blocks'].append(dict(
            dnn=dnn_layers,
            g=jnp.ones((1, metapath_level_nhid), F32),
            beta=jnp.zeros((1, metapath_level_nhid), F32),
        ))

    params['cls'] = _init_linear(next(keys), metapath_level_nhid, 1)
    return params


# ----------------------------------------------------------------------------
# One-time packing: fold attention projections, block-diagonal semantic weight,
# stack res-DNN layers, cast matmul weights to bf16.
# ----------------------------------------------------------------------------
def pack_han_params(params, feature_node_type, all_meta_path_list, nhid,
                    num_res_dnn, each_res_dnn_num):
    feat_names = ('src_feat',) + tuple(all_meta_path_list)
    packed = {
        'nhid': nhid,
        'num_blocks': num_res_dnn,
        'each_dnn': each_res_dnn_num,
        'feat_names': feat_names,
    }

    packed['feat'] = []
    for name in feat_names:
        w, b = params['node_transform'][feature_node_type[name]]
        packed['feat'].append((w.astype(BF16), b))

    packed['gat'] = {}
    for mp in all_meta_path_list:
        gp = params['edge_gat'][mp]
        fw, fb, w1 = gp['fw'], gp['fb'], gp['w1']
        fw_aug = jnp.concatenate([fw, fw @ w1], axis=1)          # (F, H+1)
        fb_aug = jnp.concatenate([fb, fb @ w1], axis=1)          # (1, H+1)
        packed['gat'][mp] = dict(
            fw_aug=fw_aug.astype(BF16), fb_aug=fb_aug,
            w2_row=gp['w2'].astype(BF16), ab=gp['ab'], bias=gp['bias'])

    num_paths = 1 + len(all_meta_path_list)
    packed['w_sel'] = jnp.kron(jnp.eye(num_paths, dtype=F32),
                               params['sem_w']).astype(BF16)     # (P*H, P)
    packed['sem_b'] = params['sem_b']

    pw, pb = params['prepare']
    packed['prep_w'], packed['prep_b'] = pw.astype(BF16), pb

    dnn_w, dnn_b, dnn_g, dnn_beta, blk_g, blk_beta = [], [], [], [], [], []
    for block in params['res_blocks']:
        for (w, b, g, beta) in block['dnn']:
            dnn_w.append(w); dnn_b.append(b); dnn_g.append(g); dnn_beta.append(beta)
        blk_g.append(block['g']); blk_beta.append(block['beta'])
    packed['dnn_w'] = jnp.stack(dnn_w, 0).astype(BF16)           # (L, H, H)
    packed['dnn_b'] = jnp.stack(dnn_b, 0)                        # (L, 1, H)
    packed['dnn_g'] = jnp.stack(dnn_g, 0)
    packed['dnn_beta'] = jnp.stack(dnn_beta, 0)
    packed['blk_g'] = jnp.stack(blk_g, 0)                        # (B, 1, H)
    packed['blk_beta'] = jnp.stack(blk_beta, 0)

    cw, cb = params['cls']
    packed['cls_w'], packed['cls_b'] = cw.astype(BF16), cb
    return packed


# ----------------------------------------------------------------------------
# HAN forward: ONE pallas_call
# ----------------------------------------------------------------------------
def han_forward(packed, sub_graph_data_dict, all_meta_path_list):
    nhid = packed['nhid']
    feat_names = packed['feat_names']
    features = sub_graph_data_dict['Feature']
    n_src = features['src_feat'].shape[0]

    inputs = []
    for name, (w, b) in zip(feat_names, packed['feat']):
        inputs += [features[name], w, b]

    mp_edge_flags = []
    for mp in all_meta_path_list:
        edges = sub_graph_data_dict['Adj'][mp]
        has = int(edges.shape[1]) > 0
        mp_edge_flags.append(has)
        if has:
            g = packed['gat'][mp]
            inputs += [jnp.asarray(edges, jnp.int32), g['fw_aug'], g['fb_aug'],
                       g['w2_row'], g['ab'], g['bias']]

    inputs += [packed['w_sel'], packed['sem_b'],
               packed['prep_w'], packed['prep_b'],
               packed['dnn_w'], packed['dnn_b'], packed['dnn_g'], packed['dnn_beta'],
               packed['blk_g'], packed['blk_beta'],
               packed['cls_w'], packed['cls_b']]

    kernel = functools.partial(
        han_fused_kernel,
        num_feats=len(feat_names),
        mp_edge_flags=tuple(mp_edge_flags),
        hid=nhid,
        num_blocks=packed['num_blocks'],
        each_dnn=packed['each_dnn'],
    )

    out = pl.pallas_call(
        kernel,
        out_shape=jax.ShapeDtypeStruct((n_src, 1), F32),
        in_specs=[_vmem() for _ in inputs],
        out_specs=_vmem(),
    )(*inputs)
    return out[:, 0]                                             # squeeze -> (N,)


# ----------------------------------------------------------------------------
# Example run
# ----------------------------------------------------------------------------
if __name__ == "__main__":
    key = jax.random.PRNGKey(0)
    k_param, k_src, k_uiu, k_ubu = jax.random.split(key, 4)

    node_type_to_feature_len = {'user': 16, 'item': 24}
    all_meta_path_list = ['UIU', 'UBU']
    node_feature_hid_len = 32     # must equal metapath_level_nhid for the stack
    metapath_level_nhid = 32
    num_res_dnn = 1
    each_res_dnn_num = 2

    params = make_han_params(
        k_param, node_type_to_feature_len, all_meta_path_list,
        node_feature_hid_len, metapath_level_nhid, num_res_dnn, each_res_dnn_num,
    )

    n_src, n_uiu, n_ubu = 8, 8, 12
    sub_graph_data_dict = {
        'Feature': {
            'src_feat': jax.random.normal(k_src, (n_src, 16), F32),
            'UIU': jax.random.normal(k_uiu, (n_uiu, 16), F32),
            'UBU': jax.random.normal(k_ubu, (n_ubu, 24), F32),
        },
        'Feature_Node_Type': {'src_feat': 'user', 'UIU': 'user', 'UBU': 'item'},
        'Adj': {
            'UIU': jnp.array([[0, 0, 1, 2, 3, 4, 5, 6, 7, 7],
                              [1, 2, 3, 4, 5, 6, 7, 0, 1, 2]], dtype=jnp.int32),
            'UBU': jnp.array([[0, 1, 1, 2, 3, 4, 5, 6, 7, 0, 2, 5],
                              [3, 4, 5, 6, 7, 8, 9, 10, 11, 0, 1, 2]], dtype=jnp.int32),
        },
    }

    packed = pack_han_params(
        params, sub_graph_data_dict['Feature_Node_Type'], all_meta_path_list,
        metapath_level_nhid, num_res_dnn, each_res_dnn_num,
    )

    out = han_forward(packed, sub_graph_data_dict, all_meta_path_list)
    out = jax.block_until_ready(out)

    assert out.shape == (n_src,)
    assert bool(jnp.all(jnp.isfinite(out)))
    assert bool(jnp.all((out > 0.0) & (out < 1.0)))
    print("KERNEL_OK")
</pallas_src>

<mosaic_0001>
module attributes {stable_mosaic.version = 11 : i64} {
  func.func @han_fused_kernel(%arg0: memref<8x16xf32, #tpu.memory_space<vmem>>, %arg1: memref<16x32xbf16, #tpu.memory_space<vmem>>, %arg2: memref<1x32xf32, #tpu.memory_space<vmem>>, %arg3: memref<8x16xf32, #tpu.memory_space<vmem>>, %arg4: memref<16x32xbf16, #tpu.memory_space<vmem>>, %arg5: memref<1x32xf32, #tpu.memory_space<vmem>>, %arg6: memref<12x24xf32, #tpu.memory_space<vmem>>, %arg7: memref<24x32xbf16, #tpu.memory_space<vmem>>, %arg8: memref<1x32xf32, #tpu.memory_space<vmem>>, %arg9: memref<2x10xi32, #tpu.memory_space<vmem>>, %arg10: memref<32x33xbf16, #tpu.memory_space<vmem>>, %arg11: memref<1x33xf32, #tpu.memory_space<vmem>>, %arg12: memref<1x32xbf16, #tpu.memory_space<vmem>>, %arg13: memref<1x1xf32, #tpu.memory_space<vmem>>, %arg14: memref<1x32xf32, #tpu.memory_space<vmem>>, %arg15: memref<2x12xi32, #tpu.memory_space<vmem>>, %arg16: memref<32x33xbf16, #tpu.memory_space<vmem>>, %arg17: memref<1x33xf32, #tpu.memory_space<vmem>>, %arg18: memref<1x32xbf16, #tpu.memory_space<vmem>>, %arg19: memref<1x1xf32, #tpu.memory_space<vmem>>, %arg20: memref<1x32xf32, #tpu.memory_space<vmem>>, %arg21: memref<96x3xbf16, #tpu.memory_space<vmem>>, %arg22: memref<1x1xf32, #tpu.memory_space<vmem>>, %arg23: memref<32x32xbf16, #tpu.memory_space<vmem>>, %arg24: memref<1x32xf32, #tpu.memory_space<vmem>>, %arg25: memref<2x32x32xbf16, #tpu.memory_space<vmem>>, %arg26: memref<2x1x32xf32, #tpu.memory_space<vmem>>, %arg27: memref<2x1x32xf32, #tpu.memory_space<vmem>>, %arg28: memref<2x1x32xf32, #tpu.memory_space<vmem>>, %arg29: memref<1x1x32xf32, #tpu.memory_space<vmem>>, %arg30: memref<1x1x32xf32, #tpu.memory_space<vmem>>, %arg31: memref<32x1xbf16, #tpu.memory_space<vmem>>, %arg32: memref<1x1xf32, #tpu.memory_space<vmem>>, %arg33: memref<8x1xf32, #tpu.memory_space<vmem>>) attributes {dimension_semantics = [], scalar_prefetch = 0 : i64, scratch_operands = 0 : i64, tpu.core_type = #tpu.core_type<tc>} {
    %c0 = arith.constant 0 : index
    %c0_0 = arith.constant 0 : index
    %0 = vector.load %arg0[%c0, %c0_0] : memref<8x16xf32, #tpu.memory_space<vmem>>, vector<8x16xf32>
    %c0_1 = arith.constant 0 : index
    %c0_2 = arith.constant 0 : index
    %1 = vector.load %arg1[%c0_1, %c0_2] : memref<16x32xbf16, #tpu.memory_space<vmem>>, vector<16x32xbf16>
    %2 = arith.truncf %0 : vector<8x16xf32> to vector<8x16xbf16>
    %cst = arith.constant dense<0.000000e+00> : vector<8x32xf32>
    %3 = tpu.matmul %2, %1, %cst {dimension_numbers = #tpu.dot_dimension_numbers<[1], [0], [0], [1], [0, 0, 1, 1], [], []>} : vector<8x16xbf16>, vector<16x32xbf16>, vector<8x32xf32> -> vector<8x32xf32>
    %c0_3 = arith.constant 0 : index
    %c0_4 = arith.constant 0 : index
    %4 = vector.load %arg2[%c0_3, %c0_4] : memref<1x32xf32, #tpu.memory_space<vmem>>, vector<1x32xf32>
    %5 = vector.broadcast %4 : vector<1x32xf32> to vector<8x32xf32>
    %6 = arith.addf %3, %5 : vector<8x32xf32>
    %c0_5 = arith.constant 0 : index
    %c0_6 = arith.constant 0 : index
    %7 = vector.load %arg3[%c0_5, %c0_6] : memref<8x16xf32, #tpu.memory_space<vmem>>, vector<8x16xf32>
    %c0_7 = arith.constant 0 : index
    %c0_8 = arith.constant 0 : index
    %8 = vector.load %arg4[%c0_7, %c0_8] : memref<16x32xbf16, #tpu.memory_space<vmem>>, vector<16x32xbf16>
    %9 = arith.truncf %7 : vector<8x16xf32> to vector<8x16xbf16>
    %cst_9 = arith.constant dense<0.000000e+00> : vector<8x32xf32>
    %10 = tpu.matmul %9, %8, %cst_9 {dimension_numbers = #tpu.dot_dimension_numbers<[1], [0], [0], [1], [0, 0, 1, 1], [], []>} : vector<8x16xbf16>, vector<16x32xbf16>, vector<8x32xf32> -> vector<8x32xf32>
    %c0_10 = arith.constant 0 : index
    %c0_11 = arith.constant 0 : index
    %11 = vector.load %arg5[%c0_10, %c0_11] : memref<1x32xf32, #tpu.memory_space<vmem>>, vector<1x32xf32>
    %12 = vector.broadcast %11 : vector<1x32xf32> to vector<8x32xf32>
    %13 = arith.addf %10, %12 : vector<8x32xf32>
    %c0_12 = arith.constant 0 : index
    %c0_13 = arith.constant 0 : index
    %14 = vector.load %arg6[%c0_12, %c0_13] : memref<12x24xf32, #tpu.memory_space<vmem>>, vector<12x24xf32>
    %c0_14 = arith.constant 0 : index
    %c0_15 = arith.constant 0 : index
    %15 = vector.load %arg7[%c0_14, %c0_15] : memref<24x32xbf16, #tpu.memory_space<vmem>>, vector<24x32xbf16>
    %16 = arith.truncf %14 : vector<12x24xf32> to vector<12x24xbf16>
    %cst_16 = arith.constant dense<0.000000e+00> : vector<12x32xf32>
    %17 = tpu.matmul %16, %15, %cst_16 {dimension_numbers = #tpu.dot_dimension_numbers<[1], [0], [0], [1], [0, 0, 1, 1], [], []>} : vector<12x24xbf16>, vector<24x32xbf16>, vector<12x32xf32> -> vector<12x32xf32>
    %c0_17 = arith.constant 0 : index
    %c0_18 = arith.constant 0 : index
    %18 = vector.load %arg8[%c0_17, %c0_18] : memref<1x32xf32, #tpu.memory_space<vmem>>, vector<1x32xf32>
    %19 = vector.broadcast %18 : vector<1x32xf32> to vector<12x32xf32>
    %20 = arith.addf %17, %19 : vector<12x32xf32>
    %c0_19 = arith.constant 0 : index
    %c0_20 = arith.constant 0 : index
    %21 = vector.load %arg10[%c0_19, %c0_20] : memref<32x33xbf16, #tpu.memory_space<vmem>>, vector<32x33xbf16>
    %22 = arith.truncf %6 : vector<8x32xf32> to vector<8x32xbf16>
    %cst_21 = arith.constant dense<0.000000e+00> : vector<8x33xf32>
    %23 = tpu.matmul %22, %21, %cst_21 {dimension_numbers = #tpu.dot_dimension_numbers<[1], [0], [0], [1], [0, 0, 1, 1], [], []>} : vector<8x32xbf16>, vector<32x33xbf16>, vector<8x33xf32> -> vector<8x33xf32>
    %c0_22 = arith.constant 0 : index
    %c0_23 = arith.constant 0 : index
    %24 = vector.load %arg11[%c0_22, %c0_23] : memref<1x33xf32, #tpu.memory_space<vmem>>, vector<1x33xf32>
    %25 = vector.broadcast %24 : vector<1x33xf32> to vector<8x33xf32>
    %26 = arith.addf %23, %25 : vector<8x33xf32>
    %c0_24 = arith.constant 0 : index
    %c0_25 = arith.constant 0 : index
    %27 = vector.load %arg10[%c0_24, %c0_25] : memref<32x33xbf16, #tpu.memory_space<vmem>>, vector<32x33xbf16>
    %28 = arith.truncf %13 : vector<8x32xf32> to vector<8x32xbf16>
    %cst_26 = arith.constant dense<0.000000e+00> : vector<8x33xf32>
    %29 = tpu.matmul %28, %27, %cst_26 {dimension_numbers = #tpu.dot_dimension_numbers<[1], [0], [0], [1], [0, 0, 1, 1], [], []>} : vector<8x32xbf16>, vector<32x33xbf16>, vector<8x33xf32> -> vector<8x33xf32>
    %c0_27 = arith.constant 0 : index
    %c0_28 = arith.constant 0 : index
    %30 = vector.load %arg11[%c0_27, %c0_28] : memref<1x33xf32, #tpu.memory_space<vmem>>, vector<1x33xf32>
    %31 = vector.broadcast %30 : vector<1x33xf32> to vector<8x33xf32>
    %32 = arith.addf %29, %31 : vector<8x33xf32>
    %33 = vector.extract_strided_slice %32 {offsets = [0, 0], sizes = [8, 32], strides = [1, 1]} : vector<8x33xf32> to vector<8x32xf32>
    %34 = vector.extract_strided_slice %26 {offsets = [0, 32], sizes = [8, 1], strides = [1, 1]} : vector<8x33xf32> to vector<8x1xf32>
    %c0_29 = arith.constant 0 : index
    %c0_30 = arith.constant 0 : index
    %35 = vector.load %arg12[%c0_29, %c0_30] : memref<1x32xbf16, #tpu.memory_space<vmem>>, vector<1x32xbf16>
    %36 = arith.truncf %33 : vector<8x32xf32> to vector<8x32xbf16>
    %cst_31 = arith.constant dense<0.000000e+00> : vector<1x8xf32>
    %37 = tpu.matmul %35, %36, %cst_31 {dimension_numbers = #tpu.dot_dimension_numbers<[1], [1], [0], [0], [0, 0, 1, 0], [], []>} : vector<1x32xbf16>, vector<8x32xbf16>, vector<1x8xf32> -> vector<1x8xf32>
    %38 = vector.broadcast %34 : vector<8x1xf32> to vector<8x8xf32>
    %39 = vector.broadcast %37 : vector<1x8xf32> to vector<8x8xf32>
    %40 = arith.addf %38, %39 : vector<8x8xf32>
    %c0_32 = arith.constant 0 : index
    %c0_33 = arith.constant 0 : index
    %41 = vector.load %arg13[%c0_32, %c0_33] : memref<1x1xf32, #tpu.memory_space<vmem>>, vector<1x1xf32>
    %42 = vector.broadcast %41 : vector<1x1xf32> to vector<8x8xf32>
    %43 = arith.addf %40, %42 : vector<8x8xf32>
    %44 = math.tanh %43 : vector<8x8xf32>
    %c0_34 = arith.constant 0 : index
    %c0_35 = arith.constant 0 : index
    %45 = vector.load %arg9[%c0_34, %c0_35] : memref<2x10xi32, #tpu.memory_space<vmem>>, vector<1x10xi32>
    %c1 = arith.constant 1 : index
    %c0_36 = arith.constant 0 : index
    %46 = vector.load %arg9[%c1, %c0_36] : memref<2x10xi32, #tpu.memory_space<vmem>>, vector<1x10xi32>
    %47 = tpu.iota {dimensions = array<i32: 0>} : vector<8x10xi32>
    %48 = vector.broadcast %45 : vector<1x10xi32> to vector<8x10xi32>
    %49 = arith.cmpi eq, %47, %48 : vector<8x10xi32>
    %50 = tpu.iota {dimensions = array<i32: 0>} : vector<8x10xi32>
    %51 = vector.broadcast %46 : vector<1x10xi32> to vector<8x10xi32>
    %52 = arith.cmpi eq, %50, %51 : vector<8x10xi32>
    %53 = arith.extui %49 : vector<8x10xi1> to vector<8x10xi32>
    %54 = arith.sitofp %53 : vector<8x10xi32> to vector<8x10xf32>
    %55 = arith.extui %52 : vector<8x10xi1> to vector<8x10xi32>
    %56 = arith.sitofp %55 : vector<8x10xi32> to vector<8x10xf32>
    %cst_37 = arith.constant dense<0.000000e+00> : vector<8x8xf32>
    %57 = tpu.matmul %54, %56, %cst_37 {dimension_numbers = #tpu.dot_dimension_numbers<[1], [1], [0], [0], [0, 0, 1, 0], [], []>} : vector<8x10xf32>, vector<8x10xf32>, vector<8x8xf32> -> vector<8x8xf32>
    %cst_38 = arith.constant 5.000000e-01 : f32
    %58 = vector.broadcast %cst_38 : f32 to vector<8x8xf32>
    %59 = arith.cmpf ogt, %57, %58 : vector<8x8xf32>
    %cst_39 = arith.constant -1.000000e+30 : f32
    %60 = vector.broadcast %cst_39 : f32 to vector<8x8xf32>
    %61 = arith.select %59, %44, %60 : vector<8x8xi1>, vector<8x8xf32>
    %cst_40 = arith.constant dense<0xFF800000> : vector<8xf32>
    %62 = vector.multi_reduction <maximumf>, %61, %cst_40 [1] : vector<8x8xf32> to vector<8xf32>
    %63 = vector.shape_cast %62 : vector<8xf32> to vector<8x1xf32>
    %64 = vector.broadcast %63 : vector<8x1xf32> to vector<8x8xf32>
    %65 = arith.subf %61, %64 : vector<8x8xf32>
    %66 = math.exp %65 : vector<8x8xf32>
    %cst_41 = arith.constant 0.000000e+00 : f32
    %67 = vector.broadcast %cst_41 : f32 to vector<8x8xf32>
    %68 = arith.select %59, %66, %67 : vector<8x8xi1>, vector<8x8xf32>
    %cst_42 = arith.constant dense<0.000000e+00> : vector<8xf32>
    %69 = vector.multi_reduction <add>, %68, %cst_42 [1] : vector<8x8xf32> to vector<8xf32>
    %70 = vector.shape_cast %69 : vector<8xf32> to vector<8x1xf32>
    %cst_43 = arith.constant 0.000000e+00 : f32
    %71 = vector.broadcast %cst_43 : f32 to vector<8x1xf32>
    %72 = arith.cmpf ogt, %70, %71 : vector<8x1xf32>
    %cst_44 = arith.constant 1.000000e+00 : f32
    %73 = vector.broadcast %cst_44 : f32 to vector<8x1xf32>
    %74 = arith.select %72, %70, %73 : vector<8x1xi1>, vector<8x1xf32>
    %75 = tpu.reciprocal %74 {approx = true} : vector<8x1xf32> -> vector<8x1xf32>
    %76 = vector.broadcast %75 : vector<8x1xf32> to vector<8x8xf32>
    %77 = arith.mulf %68, %76 : vector<8x8xf32>
    %78 = arith.truncf %33 : vector<8x32xf32> to vector<8x32xbf16>
    %79 = arith.truncf %77 : vector<8x8xf32> to vector<8x8xbf16>
    %cst_45 = arith.constant dense<0.000000e+00> : vector<8x32xf32>
    %80 = tpu.matmul %79, %78, %cst_45 {dimension_numbers = #tpu.dot_dimension_numbers<[1], [0], [0], [1], [0, 0, 1, 1], [], []>} : vector<8x8xbf16>, vector<8x32xbf16>, vector<8x32xf32> -> vector<8x32xf32>
    %c0_46 = arith.constant 0 : index
    %c0_47 = arith.constant 0 : index
    %81 = vector.load %arg14[%c0_46, %c0_47] : memref<1x32xf32, #tpu.memory_space<vmem>>, vector<1x32xf32>
    %82 = vector.broadcast %81 : vector<1x32xf32> to vector<8x32xf32>
    %83 = arith.addf %80, %82 : vector<8x32xf32>
    %c0_48 = arith.constant 0 : index
    %c0_49 = arith.constant 0 : index
    %84 = vector.load %arg16[%c0_48, %c0_49] : memref<32x33xbf16, #tpu.memory_space<vmem>>, vector<32x33xbf16>
    %85 = arith.truncf %6 : vector<8x32xf32> to vector<8x32xbf16>
    %cst_50 = arith.constant dense<0.000000e+00> : vector<8x33xf32>
    %86 = tpu.matmul %85, %84, %cst_50 {dimension_numbers = #tpu.dot_dimension_numbers<[1], [0], [0], [1], [0, 0, 1, 1], [], []>} : vector<8x32xbf16>, vector<32x33xbf16>, vector<8x33xf32> -> vector<8x33xf32>
    %c0_51 = arith.constant 0 : index
    %c0_52 = arith.constant 0 : index
    %87 = vector.load %arg17[%c0_51, %c0_52] : memref<1x33xf32, #tpu.memory_space<vmem>>, vector<1x33xf32>
    %88 = vector.broadcast %87 : vector<1x33xf32> to vector<8x33xf32>
    %89 = arith.addf %86, %88 : vector<8x33xf32>
    %c0_53 = arith.constant 0 : index
    %c0_54 = arith.constant 0 : index
    %90 = vector.load %arg16[%c0_53, %c0_54] : memref<32x33xbf16, #tpu.memory_space<vmem>>, vector<32x33xbf16>
    %91 = arith.truncf %20 : vector<12x32xf32> to vector<12x32xbf16>
    %cst_55 = arith.constant dense<0.000000e+00> : vector<12x33xf32>
    %92 = tpu.matmul %91, %90, %cst_55 {dimension_numbers = #tpu.dot_dimension_numbers<[1], [0], [0], [1], [0, 0, 1, 1], [], []>} : vector<12x32xbf16>, vector<32x33xbf16>, vector<12x33xf32> -> vector<12x33xf32>
    %c0_56 = arith.constant 0 : index
    %c0_57 = arith.constant 0 : index
    %93 = vector.load %arg17[%c0_56, %c0_57] : memref<1x33xf32, #tpu.memory_space<vmem>>, vector<1x33xf32>
    %94 = vector.broadcast %93 : vector<1x33xf32> to vector<12x33xf32>
    %95 = arith.addf %92, %94 : vector<12x33xf32>
    %96 = vector.extract_strided_slice %95 {offsets = [0, 0], sizes = [12, 32], strides = [1, 1]} : vector<12x33xf32> to vector<12x32xf32>
    %97 = vector.extract_strided_slice %89 {offsets = [0, 32], sizes = [8, 1], strides = [1, 1]} : vector<8x33xf32> to vector<8x1xf32>
    %c0_58 = arith.constant 0 : index
    %c0_59 = arith.constant 0 : index
    %98 = vector.load %arg18[%c0_58, %c0_59] : memref<1x32xbf16, #tpu.memory_space<vmem>>, vector<1x32xbf16>
    %99 = arith.truncf %96 : vector<12x32xf32> to vector<12x32xbf16>
    %cst_60 = arith.constant dense<0.000000e+00> : vector<1x12xf32>
    %100 = tpu.matmul %98, %99, %cst_60 {dimension_numbers = #tpu.dot_dimension_numbers<[1], [1], [0], [0], [0, 0, 1, 0], [], []>} : vector<1x32xbf16>, vector<12x32xbf16>, vector<1x12xf32> -> vector<1x12xf32>
    %101 = vector.broadcast %97 : vector<8x1xf32> to vector<8x12xf32>
    %102 = vector.broadcast %100 : vector<1x12xf32> to vector<8x12xf32>
    %103 = arith.addf %101, %102 : vector<8x12xf32>
    %c0_61 = arith.constant 0 : index
    %c0_62 = arith.constant 0 : index
    %104 = vector.load %arg19[%c0_61, %c0_62] : memref<1x1xf32, #tpu.memory_space<vmem>>, vector<1x1xf32>
    %105 = vector.broadcast %104 : vector<1x1xf32> to vector<8x12xf32>
    %106 = arith.addf %103, %105 : vector<8x12xf32>
    %107 = math.tanh %106 : vector<8x12xf32>
    %c0_63 = arith.constant 0 : index
    %c0_64 = arith.constant 0 : index
    %108 = vector.load %arg15[%c0_63, %c0_64] : memref<2x12xi32, #tpu.memory_space<vmem>>, vector<1x12xi32>
    %c1_65 = arith.constant 1 : index
    %c0_66 = arith.constant 0 : index
    %109 = vector.load %arg15[%c1_65, %c0_66] : memref<2x12xi32, #tpu.memory_space<vmem>>, vector<1x12xi32>
    %110 = tpu.iota {dimensions = array<i32: 0>} : vector<8x12xi32>
    %111 = vector.broadcast %108 : vector<1x12xi32> to vector<8x12xi32>
    %112 = arith.cmpi eq, %110, %111 : vector<8x12xi32>
    %113 = tpu.iota {dimensions = array<i32: 0>} : vector<12x12xi32>
    %114 = vector.broadcast %109 : vector<1x12xi32> to vector<12x12xi32>
    %115 = arith.cmpi eq, %113, %114 : vector<12x12xi32>
    %116 = arith.extui %112 : vector<8x12xi1> to vector<8x12xi32>
    %117 = arith.sitofp %116 : vector<8x12xi32> to vector<8x12xf32>
    %118 = arith.extui %115 : vector<12x12xi1> to vector<12x12xi32>
    %119 = arith.sitofp %118 : vector<12x12xi32> to vector<12x12xf32>
    %cst_67 = arith.constant dense<0.000000e+00> : vector<8x12xf32>
    %120 = tpu.matmul %117, %119, %cst_67 {dimension_numbers = #tpu.dot_dimension_numbers<[1], [1], [0], [0], [0, 0, 1, 0], [], []>} : vector<8x12xf32>, vector<12x12xf32>, vector<8x12xf32> -> vector<8x12xf32>
    %cst_68 = arith.constant 5.000000e-01 : f32
    %121 = vector.broadcast %cst_68 : f32 to vector<8x12xf32>
    %122 = arith.cmpf ogt, %120, %121 : vector<8x12xf32>
    %cst_69 = arith.constant -1.000000e+30 : f32
    %123 = vector.broadcast %cst_69 : f32 to vector<8x12xf32>
    %124 = arith.select %122, %107, %123 : vector<8x12xi1>, vector<8x12xf32>
    %cst_70 = arith.constant dense<0xFF800000> : vector<8xf32>
    %125 = vector.multi_reduction <maximumf>, %124, %cst_70 [1] : vector<8x12xf32> to vector<8xf32>
    %126 = vector.shape_cast %125 : vector<8xf32> to vector<8x1xf32>
    %127 = vector.broadcast %126 : vector<8x1xf32> to vector<8x12xf32>
    %128 = arith.subf %124, %127 : vector<8x12xf32>
    %129 = math.exp %128 : vector<8x12xf32>
    %cst_71 = arith.constant 0.000000e+00 : f32
    %130 = vector.broadcast %cst_71 : f32 to vector<8x12xf32>
    %131 = arith.select %122, %129, %130 : vector<8x12xi1>, vector<8x12xf32>
    %cst_72 = arith.constant dense<0.000000e+00> : vector<8xf32>
    %132 = vector.multi_reduction <add>, %131, %cst_72 [1] : vector<8x12xf32> to vector<8xf32>
    %133 = vector.shape_cast %132 : vector<8xf32> to vector<8x1xf32>
    %cst_73 = arith.constant 0.000000e+00 : f32
    %134 = vector.broadcast %cst_73 : f32 to vector<8x1xf32>
    %135 = arith.cmpf ogt, %133, %134 : vector<8x1xf32>
    %cst_74 = arith.constant 1.000000e+00 : f32
    %136 = vector.broadcast %cst_74 : f32 to vector<8x1xf32>
    %137 = arith.select %135, %133, %136 : vector<8x1xi1>, vector<8x1xf32>
    %138 = tpu.reciprocal %137 {approx = true} : vector<8x1xf32> -> vector<8x1xf32>
    %139 = vector.broadcast %138 : vector<8x1xf32> to vector<8x12xf32>
    %140 = arith.mulf %131, %139 : vector<8x12xf32>
    %141 = arith.truncf %96 : vector<12x32xf32> to vector<12x32xbf16>
    %142 = arith.truncf %140 : vector<8x12xf32> to vector<8x12xbf16>
    %cst_75 = arith.constant dense<0.000000e+00> : vector<8x32xf32>
    %143 = tpu.matmul %142, %141, %cst_75 {dimension_numbers = #tpu.dot_dimension_numbers<[1], [0], [0], [1], [0, 0, 1, 1], [], []>} : vector<8x12xbf16>, vector<12x32xbf16>, vector<8x32xf32> -> vector<8x32xf32>
    %c0_76 = arith.constant 0 : index
    %c0_77 = arith.constant 0 : index
    %144 = vector.load %arg20[%c0_76, %c0_77] : memref<1x32xf32, #tpu.memory_space<vmem>>, vector<1x32xf32>
    %145 = vector.broadcast %144 : vector<1x32xf32> to vector<8x32xf32>
    %146 = arith.addf %143, %145 : vector<8x32xf32>
    %147 = tpu.concatenate %6, %83, %146 in 1 : vector<8x32xf32>, vector<8x32xf32>, vector<8x32xf32> -> vector<8x96xf32>
    %c0_78 = arith.constant 0 : index
    %c0_79 = arith.constant 0 : index
    %148 = vector.load %arg21[%c0_78, %c0_79] : memref<96x3xbf16, #tpu.memory_space<vmem>>, vector<96x3xbf16>
    %149 = arith.truncf %147 : vector<8x96xf32> to vector<8x96xbf16>
    %cst_80 = arith.constant dense<0.000000e+00> : vector<8x3xf32>
    %150 = tpu.matmul %149, %148, %cst_80 {dimension_numbers = #tpu.dot_dimension_numbers<[1], [0], [0], [1], [0, 0, 1, 1], [], []>} : vector<8x96xbf16>, vector<96x3xbf16>, vector<8x3xf32> -> vector<8x3xf32>
    %c0_81 = arith.constant 0 : index
    %c0_82 = arith.constant 0 : index
    %151 = vector.load %arg22[%c0_81, %c0_82] : memref<1x1xf32, #tpu.memory_space<vmem>>, vector<1x1xf32>
    %152 = vector.broadcast %151 : vector<1x1xf32> to vector<8x3xf32>
    %153 = arith.addf %150, %152 : vector<8x3xf32>
    %cst_83 = arith.constant 0.000000e+00 : f32
    %154 = vector.broadcast %cst_83 : f32 to vector<8x3xf32>
    %155 = arith.cmpf oge, %153, %154 : vector<8x3xf32>
    %cst_84 = arith.constant 0.00999999977 : f32
    %156 = vector.broadcast %cst_84 : f32 to vector<8x3xf32>
    %157 = arith.mulf %156, %153 : vector<8x3xf32>
    %158 = arith.select %155, %153, %157 : vector<8x3xi1>, vector<8x3xf32>
    %cst_85 = arith.constant dense<0xFF800000> : vector<8xf32>
    %159 = vector.multi_reduction <maximumf>, %158, %cst_85 [1] : vector<8x3xf32> to vector<8xf32>
    %160 = vector.shape_cast %159 : vector<8xf32> to vector<8x1xf32>
    %161 = vector.broadcast %160 : vector<8x1xf32> to vector<8x3xf32>
    %162 = arith.subf %158, %161 : vector<8x3xf32>
    %163 = math.exp %162 : vector<8x3xf32>
    %cst_86 = arith.constant dense<0.000000e+00> : vector<8xf32>
    %164 = vector.multi_reduction <add>, %163, %cst_86 [1] : vector<8x3xf32> to vector<8xf32>
    %165 = vector.shape_cast %164 : vector<8xf32> to vector<8x1xf32>
    %166 = tpu.reciprocal %165 {approx = true} : vector<8x1xf32> -> vector<8x1xf32>
    %167 = vector.broadcast %166 : vector<8x1xf32> to vector<8x3xf32>
    %168 = arith.mulf %163, %167 : vector<8x3xf32>
    %cst_87 = arith.constant 0.000000e+00 : f32
    %169 = vector.broadcast %cst_87 : f32 to vector<8x32xf32>
    %170 = vector.extract_strided_slice %168 {offsets = [0, 0], sizes = [8, 1], strides = [1, 1]} : vector<8x3xf32> to vector<8x1xf32>
    %171 = vector.broadcast %170 : vector<8x1xf32> to vector<8x32xf32>
    %172 = arith.mulf %171, %6 : vector<8x32xf32>
    %173 = arith.addf %169, %172 : vector<8x32xf32>
    %174 = vector.extract_strided_slice %168 {offsets = [0, 1], sizes = [8, 1], strides = [1, 1]} : vector<8x3xf32> to vector<8x1xf32>
    %175 = vector.broadcast %174 : vector<8x1xf32> to vector<8x32xf32>
    %176 = arith.mulf %175, %83 : vector<8x32xf32>
    %177 = arith.addf %173, %176 : vector<8x32xf32>
    %178 = vector.extract_strided_slice %168 {offsets = [0, 2], sizes = [8, 1], strides = [1, 1]} : vector<8x3xf32> to vector<8x1xf32>
    %179 = vector.broadcast %178 : vector<8x1xf32> to vector<8x32xf32>
    %180 = arith.mulf %179, %146 : vector<8x32xf32>
    %181 = arith.addf %177, %180 : vector<8x32xf32>
    %c0_88 = arith.constant 0 : index
    %c0_89 = arith.constant 0 : index
    %182 = vector.load %arg23[%c0_88, %c0_89] : memref<32x32xbf16, #tpu.memory_space<vmem>>, vector<32x32xbf16>
    %183 = arith.truncf %181 : vector<8x32xf32> to vector<8x32xbf16>
    %cst_90 = arith.constant dense<0.000000e+00> : vector<8x32xf32>
    %184 = tpu.matmul %183, %182, %cst_90 {dimension_numbers = #tpu.dot_dimension_numbers<[1], [0], [0], [1], [0, 0, 1, 1], [], []>} : vector<8x32xbf16>, vector<32x32xbf16>, vector<8x32xf32> -> vector<8x32xf32>
    %c0_91 = arith.constant 0 : index
    %c0_92 = arith.constant 0 : index
    %185 = vector.load %arg24[%c0_91, %c0_92] : memref<1x32xf32, #tpu.memory_space<vmem>>, vector<1x32xf32>
    %186 = vector.broadcast %185 : vector<1x32xf32> to vector<8x32xf32>
    %187 = arith.addf %184, %186 : vector<8x32xf32>
    %c0_93 = arith.constant 0 : index
    %c0_94 = arith.constant 0 : index
    %c0_95 = arith.constant 0 : index
    %188 = vector.load %arg25[%c0_93, %c0_94, %c0_95] : memref<2x32x32xbf16, #tpu.memory_space<vmem>>, vector<1x32x32xbf16>
    %189 = vector.shape_cast %188 : vector<1x32x32xbf16> to vector<32x32xbf16>
    %190 = arith.truncf %187 : vector<8x32xf32> to vector<8x32xbf16>
    %cst_96 = arith.constant dense<0.000000e+00> : vector<8x32xf32>
    %191 = tpu.matmul %190, %189, %cst_96 {dimension_numbers = #tpu.dot_dimension_numbers<[1], [0], [0], [1], [0, 0, 1, 1], [], []>} : vector<8x32xbf16>, vector<32x32xbf16>, vector<8x32xf32> -> vector<8x32xf32>
    %c0_97 = arith.constant 0 : index
    %c0_98 = arith.constant 0 : index
    %c0_99 = arith.constant 0 : index
    %192 = vector.load %arg26[%c0_97, %c0_98, %c0_99] : memref<2x1x32xf32, #tpu.memory_space<vmem>>, vector<1x1x32xf32>
    %193 = vector.shape_cast %192 : vector<1x1x32xf32> to vector<1x32xf32>
    %194 = vector.broadcast %193 : vector<1x32xf32> to vector<8x32xf32>
    %195 = arith.addf %191, %194 : vector<8x32xf32>
    %196 = math.tanh %195 : vector<8x32xf32>
    %c0_100 = arith.constant 0 : index
    %c0_101 = arith.constant 0 : index
    %c0_102 = arith.constant 0 : index
    %197 = vector.load %arg27[%c0_100, %c0_101, %c0_102] : memref<2x1x32xf32, #tpu.memory_space<vmem>>, vector<1x1x32xf32>
    %198 = vector.shape_cast %197 : vector<1x1x32xf32> to vector<1x32xf32>
    %c0_103 = arith.constant 0 : index
    %c0_104 = arith.constant 0 : index
    %c0_105 = arith.constant 0 : index
    %199 = vector.load %arg28[%c0_103, %c0_104, %c0_105] : memref<2x1x32xf32, #tpu.memory_space<vmem>>, vector<1x1x32xf32>
    %200 = vector.shape_cast %199 : vector<1x1x32xf32> to vector<1x32xf32>
    %cst_106 = arith.constant dense<0.000000e+00> : vector<8xf32>
    %201 = vector.multi_reduction <add>, %196, %cst_106 [1] : vector<8x32xf32> to vector<8xf32>
    %202 = vector.shape_cast %201 : vector<8xf32> to vector<8x1xf32>
    %cst_107 = arith.constant 3.200000e+01 : f32
    %203 = vector.broadcast %cst_107 : f32 to vector<8x1xf32>
    %204 = arith.divf %202, %203 : vector<8x1xf32>
    %205 = vector.broadcast %204 : vector<8x1xf32> to vector<8x32xf32>
    %206 = arith.subf %196, %205 : vector<8x32xf32>
    %207 = arith.mulf %206, %206 : vector<8x32xf32>
    %cst_108 = arith.constant dense<0.000000e+00> : vector<8xf32>
    %208 = vector.multi_reduction <add>, %207, %cst_108 [1] : vector<8x32xf32> to vector<8xf32>
    %209 = vector.shape_cast %208 : vector<8xf32> to vector<8x1xf32>
    %cst_109 = arith.constant 3.200000e+01 : f32
    %210 = vector.broadcast %cst_109 : f32 to vector<8x1xf32>
    %211 = arith.divf %209, %210 : vector<8x1xf32>
    %212 = vector.broadcast %204 : vector<8x1xf32> to vector<8x32xf32>
    %213 = arith.subf %196, %212 : vector<8x32xf32>
    %cst_110 = arith.constant 9.99999974E-6 : f32
    %214 = vector.broadcast %cst_110 : f32 to vector<8x1xf32>
    %215 = arith.addf %211, %214 : vector<8x1xf32>
    %216 = math.rsqrt %215 : vector<8x1xf32>
    %217 = vector.broadcast %216 : vector<8x1xf32> to vector<8x32xf32>
    %218 = arith.mulf %213, %217 : vector<8x32xf32>
    %219 = vector.broadcast %198 : vector<1x32xf32> to vector<8x32xf32>
    %220 = arith.mulf %218, %219 : vector<8x32xf32>
    %221 = vector.broadcast %200 : vector<1x32xf32> to vector<8x32xf32>
    %222 = arith.addf %220, %221 : vector<8x32xf32>
    %c1_111 = arith.constant 1 : index
    %c0_112 = arith.constant 0 : index
    %c0_113 = arith.constant 0 : index
    %223 = vector.load %arg25[%c1_111, %c0_112, %c0_113] : memref<2x32x32xbf16, #tpu.memory_space<vmem>>, vector<1x32x32xbf16>
    %224 = vector.shape_cast %223 : vector<1x32x32xbf16> to vector<32x32xbf16>
    %225 = arith.truncf %222 : vector<8x32xf32> to vector<8x32xbf16>
    %cst_114 = arith.constant dense<0.000000e+00> : vector<8x32xf32>
    %226 = tpu.matmul %225, %224, %cst_114 {dimension_numbers = #tpu.dot_dimension_numbers<[1], [0], [0], [1], [0, 0, 1, 1], [], []>} : vector<8x32xbf16>, vector<32x32xbf16>, vector<8x32xf32> -> vector<8x32xf32>
    %c1_115 = arith.constant 1 : index
    %c0_116 = arith.constant 0 : index
    %c0_117 = arith.constant 0 : index
    %227 = vector.load %arg26[%c1_115, %c0_116, %c0_117] : memref<2x1x32xf32, #tpu.memory_space<vmem>>, vector<1x1x32xf32>
    %228 = vector.shape_cast %227 : vector<1x1x32xf32> to vector<1x32xf32>
    %229 = vector.broadcast %228 : vector<1x32xf32> to vector<8x32xf32>
    %230 = arith.addf %226, %229 : vector<8x32xf32>
    %231 = math.tanh %230 : vector<8x32xf32>
    %c1_118 = arith.constant 1 : index
    %c0_119 = arith.constant 0 : index
    %c0_120 = arith.constant 0 : index
    %232 = vector.load %arg27[%c1_118, %c0_119, %c0_120] : memref<2x1x32xf32, #tpu.memory_space<vmem>>, vector<1x1x32xf32>
    %233 = vector.shape_cast %232 : vector<1x1x32xf32> to vector<1x32xf32>
    %c1_121 = arith.constant 1 : index
    %c0_122 = arith.constant 0 : index
    %c0_123 = arith.constant 0 : index
    %234 = vector.load %arg28[%c1_121, %c0_122, %c0_123] : memref<2x1x32xf32, #tpu.memory_space<vmem>>, vector<1x1x32xf32>
    %235 = vector.shape_cast %234 : vector<1x1x32xf32> to vector<1x32xf32>
    %cst_124 = arith.constant dense<0.000000e+00> : vector<8xf32>
    %236 = vector.multi_reduction <add>, %231, %cst_124 [1] : vector<8x32xf32> to vector<8xf32>
    %237 = vector.shape_cast %236 : vector<8xf32> to vector<8x1xf32>
    %cst_125 = arith.constant 3.200000e+01 : f32
    %238 = vector.broadcast %cst_125 : f32 to vector<8x1xf32>
    %239 = arith.divf %237, %238 : vector<8x1xf32>
    %240 = vector.broadcast %239 : vector<8x1xf32> to vector<8x32xf32>
    %241 = arith.subf %231, %240 : vector<8x32xf32>
    %242 = arith.mulf %241, %241 : vector<8x32xf32>
    %cst_126 = arith.constant dense<0.000000e+00> : vector<8xf32>
    %243 = vector.multi_reduction <add>, %242, %cst_126 [1] : vector<8x32xf32> to vector<8xf32>
    %244 = vector.shape_cast %243 : vector<8xf32> to vector<8x1xf32>
    %cst_127 = arith.constant 3.200000e+01 : f32
    %245 = vector.broadcast %cst_127 : f32 to vector<8x1xf32>
    %246 = arith.divf %244, %245 : vector<8x1xf32>
    %247 = vector.broadcast %239 : vector<8x1xf32> to vector<8x32xf32>
    %248 = arith.subf %231, %247 : vector<8x32xf32>
    %cst_128 = arith.constant 9.99999974E-6 : f32
    %249 = vector.broadcast %cst_128 : f32 to vector<8x1xf32>
    %250 = arith.addf %246, %249 : vector<8x1xf32>
    %251 = math.rsqrt %250 : vector<8x1xf32>
    %252 = vector.broadcast %251 : vector<8x1xf32> to vector<8x32xf32>
    %253 = arith.mulf %248, %252 : vector<8x32xf32>
    %254 = vector.broadcast %233 : vector<1x32xf32> to vector<8x32xf32>
    %255 = arith.mulf %253, %254 : vector<8x32xf32>
    %256 = vector.broadcast %235 : vector<1x32xf32> to vector<8x32xf32>
    %257 = arith.addf %255, %256 : vector<8x32xf32>
    %258 = arith.addf %187, %257 : vector<8x32xf32>
    %259 = math.tanh %258 : vector<8x32xf32>
    %c0_129 = arith.constant 0 : index
    %c0_130 = arith.constant 0 : index
    %c0_131 = arith.constant 0 : index
    %260 = vector.load %arg29[%c0_129, %c0_130, %c0_131] : memref<1x1x32xf32, #tpu.memory_space<vmem>>, vector<1x1x32xf32>
    %261 = vector.shape_cast %260 : vector<1x1x32xf32> to vector<1x32xf32>
    %c0_132 = arith.constant 0 : index
    %c0_133 = arith.constant 0 : index
    %c0_134 = arith.constant 0 : index
    %262 = vector.load %arg30[%c0_132, %c0_133, %c0_134] : memref<1x1x32xf32, #tpu.memory_space<vmem>>, vector<1x1x32xf32>
    %263 = vector.shape_cast %262 : vector<1x1x32xf32> to vector<1x32xf32>
    %cst_135 = arith.constant dense<0.000000e+00> : vector<8xf32>
    %264 = vector.multi_reduction <add>, %259, %cst_135 [1] : vector<8x32xf32> to vector<8xf32>
    %265 = vector.shape_cast %264 : vector<8xf32> to vector<8x1xf32>
    %cst_136 = arith.constant 3.200000e+01 : f32
    %266 = vector.broadcast %cst_136 : f32 to vector<8x1xf32>
    %267 = arith.divf %265, %266 : vector<8x1xf32>
    %268 = vector.broadcast %267 : vector<8x1xf32> to vector<8x32xf32>
    %269 = arith.subf %259, %268 : vector<8x32xf32>
    %270 = arith.mulf %269, %269 : vector<8x32xf32>
    %cst_137 = arith.constant dense<0.000000e+00> : vector<8xf32>
    %271 = vector.multi_reduction <add>, %270, %cst_137 [1] : vector<8x32xf32> to vector<8xf32>
    %272 = vector.shape_cast %271 : vector<8xf32> to vector<8x1xf32>
    %cst_138 = arith.constant 3.200000e+01 : f32
    %273 = vector.broadcast %cst_138 : f32 to vector<8x1xf32>
    %274 = arith.divf %272, %273 : vector<8x1xf32>
    %275 = vector.broadcast %267 : vector<8x1xf32> to vector<8x32xf32>
    %276 = arith.subf %259, %275 : vector<8x32xf32>
    %cst_139 = arith.constant 9.99999974E-6 : f32
    %277 = vector.broadcast %cst_139 : f32 to vector<8x1xf32>
    %278 = arith.addf %274, %277 : vector<8x1xf32>
    %279 = math.rsqrt %278 : vector<8x1xf32>
    %280 = vector.broadcast %279 : vector<8x1xf32> to vector<8x32xf32>
    %281 = arith.mulf %276, %280 : vector<8x32xf32>
    %282 = vector.broadcast %261 : vector<1x32xf32> to vector<8x32xf32>
    %283 = arith.mulf %281, %282 : vector<8x32xf32>
    %284 = vector.broadcast %263 : vector<1x32xf32> to vector<8x32xf32>
    %285 = arith.addf %283, %284 : vector<8x32xf32>
    %c0_140 = arith.constant 0 : index
    %c0_141 = arith.constant 0 : index
    %286 = vector.load %arg31[%c0_140, %c0_141] : memref<32x1xbf16, #tpu.memory_space<vmem>>, vector<32x1xbf16>
    %287 = arith.truncf %285 : vector<8x32xf32> to vector<8x32xbf16>
    %cst_142 = arith.constant dense<0.000000e+00> : vector<8x1xf32>
    %288 = tpu.matmul %287, %286, %cst_142 {dimension_numbers = #tpu.dot_dimension_numbers<[1], [0], [0], [1], [0, 0, 1, 1], [], []>} : vector<8x32xbf16>, vector<32x1xbf16>, vector<8x1xf32> -> vector<8x1xf32>
    %c0_143 = arith.constant 0 : index
    %c0_144 = arith.constant 0 : index
    %289 = vector.load %arg32[%c0_143, %c0_144] : memref<1x1xf32, #tpu.memory_space<vmem>>, vector<1x1xf32>
    %290 = vector.broadcast %289 : vector<1x1xf32> to vector<8x1xf32>
    %291 = arith.addf %288, %290 : vector<8x1xf32>
    %cst_145 = arith.constant 0.000000e+00 : f32
    %292 = vector.broadcast %cst_145 : f32 to vector<8x1xf32>
    %293 = arith.subf %292, %291 : vector<8x1xf32>
    %294 = math.exp %293 : vector<8x1xf32>
    %cst_146 = arith.constant 1.000000e+00 : f32
    %295 = vector.broadcast %cst_146 : f32 to vector<8x1xf32>
    %296 = arith.addf %295, %294 : vector<8x1xf32>
    %cst_147 = arith.constant 1.000000e+00 : f32
    %297 = vector.broadcast %cst_147 : f32 to vector<8x1xf32>
    %298 = arith.divf %297, %296 : vector<8x1xf32>
    %c0_148 = arith.constant 0 : index
    %c0_149 = arith.constant 0 : index
    %299 = vector.load %arg33[%c0_148, %c0_149] : memref<8x1xf32, #tpu.memory_space<vmem>>, vector<8x1xf32>
    tpu.vector_store %arg33[%c0_148, %c0_149], %298 {strides = array<i32>} : memref<8x1xf32, #tpu.memory_space<vmem>>, vector<8x1xf32>,
    return
  }
}

</mosaic_0001>

<llo_original>
// kernel: tpu_custom_call.1
$region0: #{tpu_custom_call.1}
  #allocation0 [shape = 'u32[]', space=smem, size = 0x4, offset = 0x4, fixed_abs, tag = 'smem constant byte address 0x4 - core index']
  #allocation1 [shape = 'u32[144,128]{1,0:T(1,128)}', space=vmem, size = 0x12000, scoped, tag = 'internal scratch']
  #allocation2 [shape = 'f32[1,1]{1,0:T(1,128)S(1)}', space=vmem, size = 0x200, scoped, tag = 'scoped memory for tpu_custom_call.1']
  #allocation3 [shape = 'f32[1,1]{1,0:T(1,128)S(1)}', space=vmem, size = 0x200, scoped, tag = 'scoped memory for tpu_custom_call.1']
  #allocation4 [shape = 'f32[1,1]{1,0:T(1,128)S(1)}', space=vmem, size = 0x200, scoped, tag = 'scoped memory for tpu_custom_call.1']
  #allocation5 [shape = 'f32[1,1]{1,0:T(1,128)S(1)}', space=vmem, size = 0x200, scoped, tag = 'scoped memory for tpu_custom_call.1']
  %s0 = inlined_call_operand.smem [shape: u32[34], index: -1, kind: input, shape index: {}]
  %s1 = sld [smem:[%s0]]
  %s2 = scalar_lea.smem %s0, 1
  %s3 = sld [smem:[%s2]]
  %s4 = scalar_lea.smem %s0, 2
  %s5 = sld [smem:[%s4]]
  %s6 = scalar_lea.smem %s0, 3
  %s7 = sld [smem:[%s6]]
  %s8 = scalar_lea.smem %s0, 4
  %s9 = sld [smem:[%s8]]
  %s10 = scalar_lea.smem %s0, 5
  %s11 = sld [smem:[%s10]]
  %s12 = scalar_lea.smem %s0, 6
  %s13 = sld [smem:[%s12]]
  %s14 = scalar_lea.smem %s0, 7
  %s15 = sld [smem:[%s14]]
  %s16 = scalar_lea.smem %s0, 8
  %s17 = sld [smem:[%s16]]
  %s18 = scalar_lea.smem %s0, 9
  %s19 = sld [smem:[%s18]]
  %s20 = scalar_lea.smem %s0, 10
  %s21 = sld [smem:[%s20]]
  %s22 = scalar_lea.smem %s0, 11
  %s23 = sld [smem:[%s22]]
  %s24 = scalar_lea.smem %s0, 12
  %s25 = sld [smem:[%s24]]
  %s26 = scalar_lea.smem %s0, 13
  %s27 = sld [smem:[%s26]]
  %s28 = scalar_lea.smem %s0, 14
  %s29 = sld [smem:[%s28]]
  %s30 = scalar_lea.smem %s0, 15
  %s31 = sld [smem:[%s30]]
  %s32 = scalar_lea.smem %s0, 16
  %s33 = sld [smem:[%s32]]
  %s34 = scalar_lea.smem %s0, 17
  %s35 = sld [smem:[%s34]]
  %s36 = scalar_lea.smem %s0, 18
  %s37 = sld [smem:[%s36]]
  %s38 = scalar_lea.smem %s0, 19
  %s39 = sld [smem:[%s38]]
  %s40 = scalar_lea.smem %s0, 20
  %s41 = sld [smem:[%s40]]
  %s42 = scalar_lea.smem %s0, 21
  %s43 = sld [smem:[%s42]]
  %s44 = scalar_lea.smem %s0, 22
  %s45 = sld [smem:[%s44]]
  %s46 = scalar_lea.smem %s0, 23
  %s47 = sld [smem:[%s46]]
  %s48 = scalar_lea.smem %s0, 24
  %s49 = sld [smem:[%s48]]
  %s50 = scalar_lea.smem %s0, 25
  %s51 = sld [smem:[%s50]]
  %s52 = scalar_lea.smem %s0, 26
  %s53 = sld [smem:[%s52]]
  %s54 = scalar_lea.smem %s0, 27
  %s55 = sld [smem:[%s54]]
  %s56 = scalar_lea.smem %s0, 28
  %s57 = sld [smem:[%s56]]
  %s58 = scalar_lea.smem %s0, 29
  %s59 = sld [smem:[%s58]]
  %s60 = scalar_lea.smem %s0, 30
  %s61 = sld [smem:[%s60]]
  %s62 = scalar_lea.smem %s0, 31
  %s63 = sld [smem:[%s62]]
  %s64 = scalar_lea.smem %s0, 32
  %s65 = sld [smem:[%s64]]
  %s66 = scalar_lea.smem %s0, 33
  %s67 = sld [smem:[%s66]]
  %s68 = sld [smem:[#allocation0]]
  $region170: #{tpu_custom_call.1} parent=0
    _
  %s70 = ssub.s32 1, %s68
  %s71 = scalar_select 0, %s70, %s68
  %v72 = vstv %s27
  %73 = vst [vmem:[#allocation2] sm:$0x1] %v72
  %v74 = vstv %s39
  %75 = vst [vmem:[#allocation3] sm:$0x1] %v74
  %v76 = vstv %s45
  %77 = vst [vmem:[#allocation4] sm:$0x1] %v76
  %v78 = vstv %s65
  %79 = vst [vmem:[#allocation5] sm:$0x1] %v78
  $region1: #{tpu_custom_call.1} parent=0
    #allocation6 [shape = 'u8[4096]{0}', space=vmem, size = 0x1000, scoped, tag = 'input window, operand 0, single buffered']
    #allocation7 [shape = 's32[1]{0}', space=sflag, size = 0x4, scoped, tag = 'scoped memory for tpu_custom_call.1']
    #allocation8 [shape = 'u8[4096]{0}', space=vmem, size = 0x1000, scoped, tag = 'input window, operand 1, single buffered']
    #allocation9 [shape = 's32[1]{0}', space=sflag, size = 0x4, scoped, tag = 'scoped memory for tpu_custom_call.1']
    #allocation10 [shape = 'u8[512]{0}', space=vmem, size = 0x400, scoped, tag = 'input window, operand 2, single buffered']
    #allocation11 [shape = 'u8[4096]{0}', space=vmem, size = 0x1000, scoped, tag = 'input window, operand 3, single buffered']
    #allocation12 [shape = 's32[1]{0}', space=sflag, size = 0x4, scoped, tag = 'scoped memory for tpu_custom_call.1']
    #allocation13 [shape = 'u8[4096]{0}', space=vmem, size = 0x1000, scoped, tag = 'input window, operand 4, single buffered']
    #allocation14 [shape = 'u8[512]{0}', space=vmem, size = 0x400, scoped, tag = 'input window, operand 5, single buffered']
    #allocation15 [shape = 's32[1]{0}', space=sflag, size = 0x4, scoped, tag = 'scoped memory for tpu_custom_call.1']
    #allocation16 [shape = 'u8[512]{0}', space=vmem, size = 0x400, scoped, tag = 'input window, operand 8, single buffered']
    %80 = vsyncpa [#allocation7], 0
    %81 = vsyncpa [#allocation9], 0
    %82 = vsyncpa [#allocation12], 0
    %83 = vsyncpa [#allocation15], 0
    // Predicated region
    $region2: #{tpu_custom_call.1} parent=1 // pred_check
      _
    $region3: #{tpu_custom_call.1} parent=1 // pred_check_branch
      %85 = sbr.rel (0) target = $region5
    $region4: #{tpu_custom_call.1} parent=1 // pred_region
      %s87 = ssub.s32 128, 128
      %88 = vsyncadd [#allocation7], %s87
      %s90 = sshll.u32 [#allocation6], 4
      %s91 = int_to_ptr.vmem [resolvable:$true] %s90
      %93 = dma.hbm_to_vmem [thread:$0]  %s1, 128, %s91, [#allocation7]
    $region5: #{tpu_custom_call.1} parent=1 // pred_fallthru
      _
    // Predicated region
    $region6: #{tpu_custom_call.1} parent=1 // pred_check
      _
    $region7: #{tpu_custom_call.1} parent=1 // pred_check_branch
      %95 = sbr.rel (0) target = $region9
    $region8: #{tpu_custom_call.1} parent=1 // pred_region
      %s97 = ssub.s32 128, 128
      %98 = vsyncadd [#allocation9], %s97
      %s99 = sshll.u32 [#allocation8], 4
      %s100 = int_to_ptr.vmem [resolvable:$true] %s99
      %105 = dma.hbm_to_vmem [thread:$0]  %s3, 128, %s100, [#allocation9], 64, 64, 4
    $region9: #{tpu_custom_call.1} parent=1 // pred_fallthru
      _
    // Predicated region
    $region10: #{tpu_custom_call.1} parent=1 // pred_check
      _
    $region11: #{tpu_custom_call.1} parent=1 // pred_check_branch
      %107 = sbr.rel (0) target = $region13
    $region12: #{tpu_custom_call.1} parent=1 // pred_region
      %s109 = ssub.s32 16, 16
      %110 = vsyncadd [#allocation9], %s109
      %s112 = sshll.u32 [#allocation10], 4
      %s113 = int_to_ptr.vmem [resolvable:$true] %s112
      %115 = dma.hbm_to_vmem [thread:$0]  %s5, 16, %s113, [#allocation9]
    $region13: #{tpu_custom_call.1} parent=1 // pred_fallthru
      _
    // Predicated region
    $region14: #{tpu_custom_call.1} parent=1 // pred_check
      _
    $region15: #{tpu_custom_call.1} parent=1 // pred_check_branch
      %117 = sbr.rel (0) target = $region17
    $region16: #{tpu_custom_call.1} parent=1 // pred_region
      %s119 = ssub.s32 128, 128
      %120 = vsyncadd [#allocation12], %s119
      %s122 = sshll.u32 [#allocation11], 4
      %s123 = int_to_ptr.vmem [resolvable:$true] %s122
      %125 = dma.hbm_to_vmem [thread:$0]  %s7, 128, %s123, [#allocation12]
    $region17: #{tpu_custom_call.1} parent=1 // pred_fallthru
      _
    // Predicated region
    $region18: #{tpu_custom_call.1} parent=1 // pred_check
      _
    $region19: #{tpu_custom_call.1} parent=1 // pred_check_branch
      %127 = sbr.rel (0) target = $region21
    $region20: #{tpu_custom_call.1} parent=1 // pred_region
      %s129 = ssub.s32 128, 128
      %130 = vsyncadd [#allocation12], %s129
      %s131 = sshll.u32 [#allocation13], 4
      %s132 = int_to_ptr.vmem [resolvable:$true] %s131
      %137 = dma.hbm_to_vmem [thread:$0]  %s9, 128, %s132, [#allocation12], 64, 64, 4
    $region21: #{tpu_custom_call.1} parent=1 // pred_fallthru
      _
    // Predicated region
    $region22: #{tpu_custom_call.1} parent=1 // pred_check
      _
    $region23: #{tpu_custom_call.1} parent=1 // pred_check_branch
      %139 = sbr.rel (0) target = $region25
    $region24: #{tpu_custom_call.1} parent=1 // pred_region
      %s141 = ssub.s32 16, 16
      %142 = vsyncadd [#allocation15], %s141
      %s144 = sshll.u32 [#allocation14], 4
      %s145 = int_to_ptr.vmem [resolvable:$true] %s144
      %147 = dma.hbm_to_vmem [thread:$0]  %s11, 16, %s145, [#allocation15]
    $region25: #{tpu_custom_call.1} parent=1 // pred_fallthru
      _
    // Predicated region
    $region26: #{tpu_custom_call.1} parent=1 // pred_check
      _
    $region27: #{tpu_custom_call.1} parent=1 // pred_check_branch
      %149 = sbr.rel (0) target = $region29
    $region28: #{tpu_custom_call.1} parent=1 // pred_region
      _
    $region29: #{tpu_custom_call.1} parent=1 // pred_fallthru
      _
    // Predicated region
    $region30: #{tpu_custom_call.1} parent=1 // pred_check
      _
    $region31: #{tpu_custom_call.1} parent=1 // pred_check_branch
      %151 = sbr.rel (0) target = $region33
    $region32: #{tpu_custom_call.1} parent=1 // pred_region
      _
    $region33: #{tpu_custom_call.1} parent=1 // pred_fallthru
      _
    // Predicated region
    $region34: #{tpu_custom_call.1} parent=1 // pred_check
      _
    $region35: #{tpu_custom_call.1} parent=1 // pred_check_branch
      %153 = sbr.rel (0) target = $region37
    $region36: #{tpu_custom_call.1} parent=1 // pred_region
      %s155 = ssub.s32 16, 16
      %156 = vsyncadd [#allocation15], %s155
      %s158 = sshll.u32 [#allocation16], 4
      %s159 = int_to_ptr.vmem [resolvable:$true] %s158
      %161 = dma.hbm_to_vmem [thread:$0]  %s17, 16, %s159, [#allocation15]
    $region37: #{tpu_custom_call.1} parent=1 // pred_fallthru
      _
    // Predicated region
    $region38: #{tpu_custom_call.1} parent=1 // pred_check
      _
    $region39: #{tpu_custom_call.1} parent=1 // pred_check_branch
      %163 = sbr.rel (0) target = $region41
    $region40: #{tpu_custom_call.1} parent=1 // pred_region
      _
    $region41: #{tpu_custom_call.1} parent=1 // pred_fallthru
      _
    // Predicated region
    $region42: #{tpu_custom_call.1} parent=1 // pred_check
      _
    $region43: #{tpu_custom_call.1} parent=1 // pred_check_branch
      %165 = sbr.rel (0) target = $region45
    $region44: #{tpu_custom_call.1} parent=1 // pred_region
      _
    $region45: #{tpu_custom_call.1} parent=1 // pred_fallthru
      _
    // Predicated region
    $region46: #{tpu_custom_call.1} parent=1 // pred_check
      _
    $region47: #{tpu_custom_call.1} parent=1 // pred_check_branch
      %167 = sbr.rel (0) target = $region49
    $region48: #{tpu_custom_call.1} parent=1 // pred_region
      _
    $region49: #{tpu_custom_call.1} parent=1 // pred_fallthru
      _
    // Predicated region
    $region50: #{tpu_custom_call.1} parent=1 // pred_check
      _
    $region51: #{tpu_custom_call.1} parent=1 // pred_check_branch
      %169 = sbr.rel (0) target = $region53
    $region52: #{tpu_custom_call.1} parent=1 // pred_region
      _
    $region53: #{tpu_custom_call.1} parent=1 // pred_fallthru
      _
    // Predicated region
    $region54: #{tpu_custom_call.1} parent=1 // pred_check
      _
    $region55: #{tpu_custom_call.1} parent=1 // pred_check_branch
      %171 = sbr.rel (0) target = $region57
    $region56: #{tpu_custom_call.1} parent=1 // pred_region
      _
    $region57: #{tpu_custom_call.1} parent=1 // pred_fallthru
      _
    // Predicated region
    $region58: #{tpu_custom_call.1} parent=1 // pred_check
      _
    $region59: #{tpu_custom_call.1} parent=1 // pred_check_branch
      %173 = sbr.rel (0) target = $region61
    $region60: #{tpu_custom_call.1} parent=1 // pred_region
      _
    $region61: #{tpu_custom_call.1} parent=1 // pred_fallthru
      _
    // Predicated region
    $region62: #{tpu_custom_call.1} parent=1 // pred_check
      _
    $region63: #{tpu_custom_call.1} parent=1 // pred_check_branch
      %175 = sbr.rel (0) target = $region65
    $region64: #{tpu_custom_call.1} parent=1 // pred_region
      _
    $region65: #{tpu_custom_call.1} parent=1 // pred_fallthru
      _
    // Predicated region
    $region66: #{tpu_custom_call.1} parent=1 // pred_check
      _
    $region67: #{tpu_custom_call.1} parent=1 // pred_check_branch
      %177 = sbr.rel (0) target = $region69
    $region68: #{tpu_custom_call.1} parent=1 // pred_region
      _
    $region69: #{tpu_custom_call.1} parent=1 // pred_fallthru
      _
    // Predicated region
    $region70: #{tpu_custom_call.1} parent=1 // pred_check
      _
    $region71: #{tpu_custom_call.1} parent=1 // pred_check_branch
      %179 = sbr.rel (0) target = $region73
    $region72: #{tpu_custom_call.1} parent=1 // pred_region
      _
    $region73: #{tpu_custom_call.1} parent=1 // pred_fallthru
      _
    // Predicated region
    $region74: #{tpu_custom_call.1} parent=1 // pred_check
      _
    $region75: #{tpu_custom_call.1} parent=1 // pred_check_branch
      %181 = sbr.rel (0) target = $region77
    $region76: #{tpu_custom_call.1} parent=1 // pred_region
      _
    $region77: #{tpu_custom_call.1} parent=1 // pred_fallthru
      _
    // Predicated region
    $region78: #{tpu_custom_call.1} parent=1 // pred_check
      _
    $region79: #{tpu_custom_call.1} parent=1 // pred_check_branch
      %183 = sbr.rel (0) target = $region81
    $region80: #{tpu_custom_call.1} parent=1 // pred_region
      _
    $region81: #{tpu_custom_call.1} parent=1 // pred_fallthru
      _
    // Predicated region
    $region82: #{tpu_custom_call.1} parent=1 // pred_check
      _
    $region83: #{tpu_custom_call.1} parent=1 // pred_check_branch
      %185 = sbr.rel (0) target = $region85
    $region84: #{tpu_custom_call.1} parent=1 // pred_region
      _
    $region85: #{tpu_custom_call.1} parent=1 // pred_fallthru
      _
    // Predicated region
    $region86: #{tpu_custom_call.1} parent=1 // pred_check
      _
    $region87: #{tpu_custom_call.1} parent=1 // pred_check_branch
      %187 = sbr.rel (0) target = $region89
    $region88: #{tpu_custom_call.1} parent=1 // pred_region
      _
    $region89: #{tpu_custom_call.1} parent=1 // pred_fallthru
      _
    // Predicated region
    $region90: #{tpu_custom_call.1} parent=1 // pred_check
      _
    $region91: #{tpu_custom_call.1} parent=1 // pred_check_branch
      %189 = sbr.rel (0) target = $region93
    $region92: #{tpu_custom_call.1} parent=1 // pred_region
      _
    $region93: #{tpu_custom_call.1} parent=1 // pred_fallthru
      _
    // Predicated region
    $region94: #{tpu_custom_call.1} parent=1 // pred_check
      _
    $region95: #{tpu_custom_call.1} parent=1 // pred_check_branch
      %191 = sbr.rel (0) target = $region97
    $region96: #{tpu_custom_call.1} parent=1 // pred_region
      _
    $region97: #{tpu_custom_call.1} parent=1 // pred_fallthru
      _
    // Predicated region
    $region98: #{tpu_custom_call.1} parent=1 // pred_check
      _
    $region99: #{tpu_custom_call.1} parent=1 // pred_check_branch
      %193 = sbr.rel (0) target = $region101
    $region100: #{tpu_custom_call.1} parent=1 // pred_region
      _
    $region101: #{tpu_custom_call.1} parent=1 // pred_fallthru
      _
    // Predicated region
    $region102: #{tpu_custom_call.1} parent=1 // pred_check
      _
    $region103: #{tpu_custom_call.1} parent=1 // pred_check_branch
      %195 = sbr.rel (0) target = $region105
    $region104: #{tpu_custom_call.1} parent=1 // pred_region
      _
    $region105: #{tpu_custom_call.1} parent=1 // pred_fallthru
      _
    // Predicated region
    $region106: #{tpu_custom_call.1} parent=1 // pred_check
      _
    $region107: #{tpu_custom_call.1} parent=1 // pred_check_branch
      %197 = sbr.rel (0) target = $region109
    $region108: #{tpu_custom_call.1} parent=1 // pred_region
      _
    $region109: #{tpu_custom_call.1} parent=1 // pred_fallthru
      _
    // Predicated region
    $region110: #{tpu_custom_call.1} parent=1 // pred_check
      _
    $region111: #{tpu_custom_call.1} parent=1 // pred_check_branch
      %199 = sbr.rel (0) target = $region113
    $region112: #{tpu_custom_call.1} parent=1 // pred_region
      _
    $region113: #{tpu_custom_call.1} parent=1 // pred_fallthru
      _
    // Predicated region
    $region114: #{tpu_custom_call.1} parent=1 // pred_check
      _
    $region115: #{tpu_custom_call.1} parent=1 // pred_check_branch
      %201 = sbr.rel (0) target = $region117
    $region116: #{tpu_custom_call.1} parent=1 // pred_region
      _
    $region117: #{tpu_custom_call.1} parent=1 // pred_fallthru
      _
    // Predicated region
    $region118: #{tpu_custom_call.1} parent=1 // pred_check
      _
    $region119: #{tpu_custom_call.1} parent=1 // pred_check_branch
      %203 = sbr.rel (0) target = $region121
    $region120: #{tpu_custom_call.1} parent=1 // pred_region
      _
    $region121: #{tpu_custom_call.1} parent=1 // pred_fallthru
      _
    // Predicated region
    $region122: #{tpu_custom_call.1} parent=1 // pred_check
      _
    $region123: #{tpu_custom_call.1} parent=1 // pred_check_branch
      %205 = sbr.rel (0) target = $region125
    $region124: #{tpu_custom_call.1} parent=1 // pred_region
      _
    $region125: #{tpu_custom_call.1} parent=1 // pred_fallthru
      _
    // Predicated region
    $region126: #{tpu_custom_call.1} parent=1 // pred_check
      _
    $region127: #{tpu_custom_call.1} parent=1 // pred_check_branch
      %207 = sbr.rel (0) target = $region129
    $region128: #{tpu_custom_call.1} parent=1 // pred_region
      _
    $region129: #{tpu_custom_call.1} parent=1 // pred_fallthru
      _
    // Predicated region
    $region130: #{tpu_custom_call.1} parent=1 // pred_check
      _
    $region131: #{tpu_custom_call.1} parent=1 // pred_check_branch
      %209 = sbr.rel (0) target = $region133
    $region132: #{tpu_custom_call.1} parent=1 // pred_region
      _
    $region133: #{tpu_custom_call.1} parent=1 // pred_fallthru
      _
    // Predicated region
    $region134: #{tpu_custom_call.1} parent=1 // pred_check
      _
    $region135: #{tpu_custom_call.1} parent=1 // pred_check_branch
      %211 = sbr.rel (0) target = $region137
    $region136: #{tpu_custom_call.1} parent=1 // pred_region
      %212 = dma.done [#allocation7], 128
    $region137: #{tpu_custom_call.1} parent=1 // pred_fallthru
      _
    // Predicated region
    $region138: #{tpu_custom_call.1} parent=1 // pred_check
      _
    $region139: #{tpu_custom_call.1} parent=1 // pred_check_branch
      %214 = sbr.rel (0) target = $region141
    $region140: #{tpu_custom_call.1} parent=1 // pred_region
      %215 = dma.done [#allocation9], 128
    $region141: #{tpu_custom_call.1} parent=1 // pred_fallthru
      _
    // Predicated region
    $region142: #{tpu_custom_call.1} parent=1 // pred_check
      _
    $region143: #{tpu_custom_call.1} parent=1 // pred_check_branch
      %217 = sbr.rel (0) target = $region145
    $region144: #{tpu_custom_call.1} parent=1 // pred_region
      %218 = dma.done [#allocation9], 16
    $region145: #{tpu_custom_call.1} parent=1 // pred_fallthru
      _
    // Predicated region
    $region146: #{tpu_custom_call.1} parent=1 // pred_check
      _
    $region147: #{tpu_custom_call.1} parent=1 // pred_check_branch
      %220 = sbr.rel (0) target = $region149
    $region148: #{tpu_custom_call.1} parent=1 // pred_region
      %221 = dma.done [#allocation12], 128
    $region149: #{tpu_custom_call.1} parent=1 // pred_fallthru
      _
    // Predicated region
    $region150: #{tpu_custom_call.1} parent=1 // pred_check
      _
    $region151: #{tpu_custom_call.1} parent=1 // pred_check_branch
      %223 = sbr.rel (0) target = $region153
    $region152: #{tpu_custom_call.1} parent=1 // pred_region
      %224 = dma.done [#allocation12], 128
    $region153: #{tpu_custom_call.1} parent=1 // pred_fallthru
      _
    // Predicated region
    $region154: #{tpu_custom_call.1} parent=1 // pred_check
      _
    $region155: #{tpu_custom_call.1} parent=1 // pred_check_branch
      %226 = sbr.rel (0) target = $region157
    $region156: #{tpu_custom_call.1} parent=1 // pred_region
      %227 = dma.done [#allocation15], 16
    $region157: #{tpu_custom_call.1} parent=1 // pred_fallthru
      _
    // Predicated region
    $region158: #{tpu_custom_call.1} parent=1 // pred_check
      _
    $region159: #{tpu_custom_call.1} parent=1 // pred_check_branch
      %229 = sbr.rel (0) target = $region161
    $region160: #{tpu_custom_call.1} parent=1 // pred_region
      %230 = dma.done [#allocation15], 16
    $region161: #{tpu_custom_call.1} parent=1 // pred_fallthru
      _
    %v232 = vld [vmem:[#allocation6] sm:$0xff]
    %v233 = vld [vmem:[#allocation8] sm:$0xf]
    %v234 = vld [vmem:[#allocation8 + $0x4] sm:$0xf]
    %v235 = vpack.c.bf16 %v232, %v232
    %v236 = vld [vmem:[#allocation10] sm:$0x1]
    %v238 = vlaneseq
    %v239 = vshrl.u32 %v238, 7
    %v240 = vsub.s32 0, %v239
    %v241 = vrot.slane %v236, %v240
    %v245 = vunpack.c.l.b16 %v233
    %v246 = vunpack.c.l.b16 %v234
    %v247 = vpack.c.b16 %v246, %v245
    %vm249 = vcmask 130048
    %v251 = vsel %vm249, %v235, 0
    %253 = vmatprep.subr.bf16.mxu0 0
    %254 = vmatpush1.bf16.msra.mxu0 %v247
    %255 = vmatprep.subr.bf16.mxu0 0
    %256 = vmatpush1.bf16.msra.mxu0 0
    %257 = vmatprep.subr.bf16.mxu0 0
    %258 = vmatpush1.bf16.msra.mxu0 0
    %259 = vmatprep.subr.bf16.mxu0 0
    %260 = vmatpush1.bf16.msra.mxu0 0
    %261 = vmatprep.subr.bf16.mxu0 0
    %262 = vmatpush1.bf16.msra.mxu0 0
    %263 = vmatprep.subr.bf16.mxu0 0
    %264 = vmatpush1.bf16.msra.mxu0 0
    %265 = vmatprep.subr.bf16.mxu0 0
    %266 = vmatpush1.bf16.msra.mxu0 0
    %267 = vmatprep.subr.bf16.mxu0 0
    %268 = vmatpush1.bf16.msra.mxu0 0
    %269 = vmatprep.subr.bf16.mxu0 0
    %270 = vmatpush1.bf16.msra.mxu0 0
    %271 = vmatprep.subr.bf16.mxu0 0
    %272 = vmatpush1.bf16.msra.mxu0 0
    %273 = vmatprep.subr.bf16.mxu0 0
    %274 = vmatpush1.bf16.msra.mxu0 0
    %275 = vmatprep.subr.bf16.mxu0 0
    %276 = vmatpush1.bf16.msra.mxu0 0
    %277 = vmatprep.subr.bf16.mxu0 0
    %278 = vmatpush1.bf16.msra.mxu0 0
    %279 = vmatprep.subr.bf16.mxu0 0
    %280 = vmatpush1.bf16.msra.mxu0 0
    %281 = vmatprep.subr.bf16.mxu0 0
    %282 = vmatpush1.bf16.msra.mxu0 0
    %283 = vmatprep.subr.bf16.mxu0 0
    %284 = vmatpush1.bf16.msra.mxu0 0
    %285 = vmatprep.mubr.bf16.mxu0 0
    %286 = vmatmul.mubr.bf16.gmra.mrb[0].mxu0 %v251
    %v287 = vpop.f32.mrb[0].mxu0
    %v288 = vadd.f32 %v241, %v287
    %v289 = vpop.f32.mrb[0].mxu0
    %v290 = vpop.f32.mrb[0].mxu0
    %v291 = vpop.f32.mrb[0].mxu0
    %292 = vdwg.mxu0
    %v293 = vld [vmem:[#allocation11] sm:$0xff]
    %v294 = vld [vmem:[#allocation13] sm:$0xf]
    %v295 = vld [vmem:[#allocation13 + $0x4] sm:$0xf]
    %v296 = vpack.c.bf16 %v293, %v293
    %v297 = vld [vmem:[#allocation14] sm:$0x1]
    %v299 = vlaneseq
    %v300 = vshrl.u32 %v299, 7
    %v301 = vsub.s32 0, %v300
    %v302 = vrot.slane %v297, %v301
    %v306 = vunpack.c.l.b16 %v294
    %v307 = vunpack.c.l.b16 %v295
    %v308 = vpack.c.b16 %v307, %v306
    %v311 = vsel %vm249, %v296, 0
    %313 = vmatprep.subr.bf16.mxu0 0
    %314 = vmatpush1.bf16.msra.mxu0 %v308
    %315 = vmatprep.subr.bf16.mxu0 0
    %316 = vmatpush1.bf16.msra.mxu0 0
    %317 = vmatprep.subr.bf16.mxu0 0
    %318 = vmatpush1.bf16.msra.mxu0 0
    %319 = vmatprep.subr.bf16.mxu0 0
    %320 = vmatpush1.bf16.msra.mxu0 0
    %321 = vmatprep.subr.bf16.mxu0 0
    %322 = vmatpush1.bf16.msra.mxu0 0
    %323 = vmatprep.subr.bf16.mxu0 0
    %324 = vmatpush1.bf16.msra.mxu0 0
    %325 = vmatprep.subr.bf16.mxu0 0
    %326 = vmatpush1.bf16.msra.mxu0 0
    %327 = vmatprep.subr.bf16.mxu0 0
    %328 = vmatpush1.bf16.msra.mxu0 0
    %329 = vmatprep.subr.bf16.mxu0 0
    %330 = vmatpush1.bf16.msra.mxu0 0
    %331 = vmatprep.subr.bf16.mxu0 0
    %332 = vmatpush1.bf16.msra.mxu0 0
    %333 = vmatprep.subr.bf16.mxu0 0
    %334 = vmatpush1.bf16.msra.mxu0 0
    %335 = vmatprep.subr.bf16.mxu0 0
    %336 = vmatpush1.bf16.msra.mxu0 0
    %337 = vmatprep.subr.bf16.mxu0 0
    %338 = vmatpush1.bf16.msra.mxu0 0
    %339 = vmatprep.subr.bf16.mxu0 0
    %340 = vmatpush1.bf16.msra.mxu0 0
    %341 = vmatprep.subr.bf16.mxu0 0
    %342 = vmatpush1.bf16.msra.mxu0 0
    %343 = vmatprep.subr.bf16.mxu0 0
    %344 = vmatpush1.bf16.msra.mxu0 0
    %345 = vmatprep.mubr.bf16.mxu0 0
    %346 = vmatmul.mubr.bf16.gmra.mrb[0].mxu0 %v311
    %v347 = vpop.f32.mrb[0].mxu0
    %v348 = vadd.f32 %v302, %v347
    %v349 = vpop.f32.mrb[0].mxu0
    %v350 = vpop.f32.mrb[0].mxu0
    %v351 = vpop.f32.mrb[0].mxu0
    %352 = vdwg.mxu0
    %v353 = vld [vmem:[%s13] sm:$0xff]
    %v354 = vld [vmem:[%s13 + $0x8] sm:$0xf]
    %v355 = vld [vmem:[%s15] sm:$0xf]
    %v356 = vld [vmem:[%s15 + $0x4] sm:$0xf]
    %v357 = vld [vmem:[%s15 + $0x8] sm:$0xf]
    %v358 = vpack.c.bf16 %v354, %v353
    %v359 = vld [vmem:[#allocation16] sm:$0x1]
    %v361 = vlaneseq
    %v362 = vshrl.u32 %v361, 7
    %v363 = vsub.s32 0, %v362
    %v364 = vrot.slane %v359, %v363
    %v369 = vunpack.c.l.b16 %v355
    %v370 = vunpack.c.l.b16 %v356
    %v371 = vunpack.c.l.b16 %v357
    %v372 = vpack.c.b16 %v370, %v369
    %v373 = vpack.c.b16 %v371, %v371
    %vm375 = vcmask 195584
    %v377 = vsel %vm375, %v358, 0
    %vm379 = vcmask 1043456
    %v381 = vsel %vm379, %v373, 0
    %383 = vmatprep.subr.bf16.mxu0 0
    %384 = vmatpush1.bf16.msra.mxu0 %v372
    %385 = vmatprep.subr.bf16.mxu0 0
    %386 = vmatpush1.bf16.msra.mxu0 %v381
    %387 = vmatprep.subr.bf16.mxu0 0
    %388 = vmatpush1.bf16.msra.mxu0 0
    %389 = vmatprep.subr.bf16.mxu0 0
    %390 = vmatpush1.bf16.msra.mxu0 0
    %391 = vmatprep.subr.bf16.mxu0 0
    %392 = vmatpush1.bf16.msra.mxu0 0
    %393 = vmatprep.subr.bf16.mxu0 0
    %394 = vmatpush1.bf16.msra.mxu0 0
    %395 = vmatprep.subr.bf16.mxu0 0
    %396 = vmatpush1.bf16.msra.mxu0 0
    %397 = vmatprep.subr.bf16.mxu0 0
    %398 = vmatpush1.bf16.msra.mxu0 0
    %399 = vmatprep.subr.bf16.mxu0 0
    %400 = vmatpush1.bf16.msra.mxu0 0
    %401 = vmatprep.subr.bf16.mxu0 0
    %402 = vmatpush1.bf16.msra.mxu0 0
    %403 = vmatprep.subr.bf16.mxu0 0
    %404 = vmatpush1.bf16.msra.mxu0 0
    %405 = vmatprep.subr.bf16.mxu0 0
    %406 = vmatpush1.bf16.msra.mxu0 0
    %407 = vmatprep.subr.bf16.mxu0 0
    %408 = vmatpush1.bf16.msra.mxu0 0
    %409 = vmatprep.subr.bf16.mxu0 0
    %410 = vmatpush1.bf16.msra.mxu0 0
    %411 = vmatprep.subr.bf16.mxu0 0
    %412 = vmatpush1.bf16.msra.mxu0 0
    %413 = vmatprep.subr.bf16.mxu0 0
    %414 = vmatpush1.bf16.msra.mxu0 0
    %415 = vmatprep.mubr.bf16.mxu0 0
    %416 = vmatmul.mubr.bf16.gmra.mrb[0].mxu0 %v377
    %v417 = vpop.f32.mrb[0].mxu0
    %v418 = vadd.f32 %v364, %v417
    %v419 = vpop.f32.mrb[0].mxu0
    %v420 = vpop.f32.mrb[0].mxu0
    %v421 = vadd.f32 %v364, %v420
    %v422 = vpop.f32.mrb[0].mxu0
    %423 = vdwg.mxu0
    %v424 = vld [vmem:[%s21] sm:$0xf]
    %v425 = vld [vmem:[%s21 + $0x4] sm:$0xf]
    %v426 = vld [vmem:[%s21 + $0x8] sm:$0xf]
    %v427 = vld [vmem:[%s21 + $0xc] sm:$0xf]
    %v428 = vpack.c.bf16 %v288, %v288
    %v429 = vld [vmem:[%s23] sm:$0x1]
    %v431 = vlaneseq
    %v432 = vshrl.u32 %v431, 7
    %v433 = vsub.s32 0, %v432
    %v434 = vrot.slane %v429, %v433
    %v440 = vunpack.c.l.b16 %v424
    %v441 = vunpack.c.l.b16 %v425
    %v442 = vunpack.c.l.b16 %v426
    %v443 = vunpack.c.l.b16 %v427
    %v444 = vpack.c.b16 %v441, %v440
    %v445 = vpack.c.b16 %v443, %v442
    %vm448 = vcmask 261120
    %v450 = vsel %vm448, %v428, 0
    %452 = vmatprep.subr.bf16.mxu0 0
    %453 = vmatpush1.bf16.msra.mxu0 %v444
    %454 = vmatprep.subr.bf16.mxu0 0
    %455 = vmatpush1.bf16.msra.mxu0 %v445
    %456 = vmatprep.subr.bf16.mxu0 0
    %457 = vmatpush1.bf16.msra.mxu0 0
    %458 = vmatprep.subr.bf16.mxu0 0
    %459 = vmatpush1.bf16.msra.mxu0 0
    %460 = vmatprep.subr.bf16.mxu0 0
    %461 = vmatpush1.bf16.msra.mxu0 0
    %462 = vmatprep.subr.bf16.mxu0 0
    %463 = vmatpush1.bf16.msra.mxu0 0
    %464 = vmatprep.subr.bf16.mxu0 0
    %465 = vmatpush1.bf16.msra.mxu0 0
    %466 = vmatprep.subr.bf16.mxu0 0
    %467 = vmatpush1.bf16.msra.mxu0 0
    %468 = vmatprep.subr.bf16.mxu0 0
    %469 = vmatpush1.bf16.msra.mxu0 0
    %470 = vmatprep.subr.bf16.mxu0 0
    %471 = vmatpush1.bf16.msra.mxu0 0
    %472 = vmatprep.subr.bf16.mxu0 0
    %473 = vmatpush1.bf16.msra.mxu0 0
    %474 = vmatprep.subr.bf16.mxu0 0
    %475 = vmatpush1.bf16.msra.mxu0 0
    %476 = vmatprep.subr.bf16.mxu0 0
    %477 = vmatpush1.bf16.msra.mxu0 0
    %478 = vmatprep.subr.bf16.mxu0 0
    %479 = vmatpush1.bf16.msra.mxu0 0
    %480 = vmatprep.subr.bf16.mxu0 0
    %481 = vmatpush1.bf16.msra.mxu0 0
    %482 = vmatprep.subr.bf16.mxu0 0
    %483 = vmatpush1.bf16.msra.mxu0 0
    %484 = vmatprep.mubr.bf16.mxu0 0
    %485 = vmatmul.mubr.bf16.gmra.mrb[0].mxu0 %v450
    %v486 = vpop.f32.mrb[0].mxu0
    %v487 = vadd.f32 %v434, %v486
    %v488 = vpop.f32.mrb[0].mxu0
    %v489 = vpop.f32.mrb[0].mxu0
    %v490 = vpop.f32.mrb[0].mxu0
    %491 = vdwg.mxu0
    %v492 = vpack.c.bf16 %v348, %v348
    %v494 = vsel %vm448, %v492, 0
    %496 = vmatprep.subr.bf16.mxu0 0
    %497 = vmatpush1.bf16.msra.mxu0 %v444
    %498 = vmatprep.subr.bf16.mxu0 0
    %499 = vmatpush1.bf16.msra.mxu0 %v445
    %500 = vmatprep.subr.bf16.mxu0 0
    %501 = vmatpush1.bf16.msra.mxu0 0
    %502 = vmatprep.subr.bf16.mxu0 0
    %503 = vmatpush1.bf16.msra.mxu0 0
    %504 = vmatprep.subr.bf16.mxu0 0
    %505 = vmatpush1.bf16.msra.mxu0 0
    %506 = vmatprep.subr.bf16.mxu0 0
    %507 = vmatpush1.bf16.msra.mxu0 0
    %508 = vmatprep.subr.bf16.mxu0 0
    %509 = vmatpush1.bf16.msra.mxu0 0
    %510 = vmatprep.subr.bf16.mxu0 0
    %511 = vmatpush1.bf16.msra.mxu0 0
    %512 = vmatprep.subr.bf16.mxu0 0
    %513 = vmatpush1.bf16.msra.mxu0 0
    %514 = vmatprep.subr.bf16.mxu0 0
    %515 = vmatpush1.bf16.msra.mxu0 0
    %516 = vmatprep.subr.bf16.mxu0 0
    %517 = vmatpush1.bf16.msra.mxu0 0
    %518 = vmatprep.subr.bf16.mxu0 0
    %519 = vmatpush1.bf16.msra.mxu0 0
    %520 = vmatprep.subr.bf16.mxu0 0
    %521 = vmatpush1.bf16.msra.mxu0 0
    %522 = vmatprep.subr.bf16.mxu0 0
    %523 = vmatpush1.bf16.msra.mxu0 0
    %524 = vmatprep.subr.bf16.mxu0 0
    %525 = vmatpush1.bf16.msra.mxu0 0
    %526 = vmatprep.subr.bf16.mxu0 0
    %527 = vmatpush1.bf16.msra.mxu0 0
    %528 = vmatprep.mubr.bf16.mxu0 0
    %529 = vmatmul.mubr.bf16.gmra.mrb[0].mxu0 %v494
    %v530 = vpop.f32.mrb[0].mxu0
    %v531 = vadd.f32 %v434, %v530
    %v532 = vpop.f32.mrb[0].mxu0
    %v533 = vpop.f32.mrb[0].mxu0
    %v534 = vpop.f32.mrb[0].mxu0
    %535 = vdwg.mxu0
    %v536 = vld [vmem:[%s25] sm:$0x1]
    %v537 = vpack.c.bf16 %v531, %v531
    %v539 = vsel %vm448, %v536, 0
    %v542 = vsel %vm448, %v537, 0
    %544 = vmatprep.subr.bf16.mxu0 0
    %545 = vmatpush1.bf16.xpose.msra.mxu0 %v542
    %546 = vmatprep.subr.bf16.mxu0 0
    %547 = vmatpush1.bf16.xpose.msra.mxu0 0
    %548 = vmatprep.subr.bf16.mxu0 0
    %549 = vmatpush1.bf16.xpose.msra.mxu0 0
    %550 = vmatprep.subr.bf16.mxu0 0
    %551 = vmatpush1.bf16.xpose.msra.mxu0 0
    %552 = vmatprep.subr.bf16.mxu0 0
    %553 = vmatpush1.bf16.xpose.msra.mxu0 0
    %554 = vmatprep.subr.bf16.mxu0 0
    %555 = vmatpush1.bf16.xpose.msra.mxu0 0
    %556 = vmatprep.subr.bf16.mxu0 0
    %557 = vmatpush1.bf16.xpose.msra.mxu0 0
    %558 = vmatprep.subr.bf16.mxu0 0
    %559 = vmatpush1.bf16.xpose.msra.mxu0 0
    %560 = vmatprep.subr.bf16.mxu0 0
    %561 = vmatpush1.bf16.xpose.msra.mxu0 0
    %562 = vmatprep.subr.bf16.mxu0 0
    %563 = vmatpush1.bf16.xpose.msra.mxu0 0
    %564 = vmatprep.subr.bf16.mxu0 0
    %565 = vmatpush1.bf16.xpose.msra.mxu0 0
    %566 = vmatprep.subr.bf16.mxu0 0
    %567 = vmatpush1.bf16.xpose.msra.mxu0 0
    %568 = vmatprep.subr.bf16.mxu0 0
    %569 = vmatpush1.bf16.xpose.msra.mxu0 0
    %570 = vmatprep.subr.bf16.mxu0 0
    %571 = vmatpush1.bf16.xpose.msra.mxu0 0
    %572 = vmatprep.subr.bf16.mxu0 0
    %573 = vmatpush1.bf16.xpose.msra.mxu0 0
    %574 = vmatprep.subr.bf16.mxu0 0
    %575 = vmatpush1.bf16.xpose.msra.mxu0 0
    %576 = vmatprep.mubr.bf16.mxu0 0
    %577 = vmatmul.mubr.bf16.gmra.mrb[0].mxu0 %v539
    %v578 = vpop.f32.mrb[0].mxu0
    %v579 = vadd.f32 0.0, %v578
    %v580 = vpop.f32.mrb[0].mxu0
    %v581 = vpop.f32.mrb[0].mxu0
    %v582 = vpop.f32.mrb[0].mxu0
    %583 = vdwg.mxu0
    %585 = vset.pattern.permute.xlu0 32
    %586 = vperm.xlu0 %585, %v487
    %v587 = vpop.permute.xlu0 %586
    %v589 = vlaneseq
    %v590 = vshrl.u32 %v589, 7
    %v591 = vsub.s32 0, %v590
    %v592 = vrot.slane %v579, %v591
    %v593 = vadd.f32 %v587, %v592
    %v594 = vld [vmem:[#allocation2] sm:$0x1]
    %v596 = vlaneseq
    %v597 = vshrl.u32 %v596, 7
    %v598 = vsub.s32 0, %v597
    %v599 = vrot.slane %v594, %v598
    %600 = vset.pattern.permute.xlu0 0
    %601 = vperm.xlu0 %600, %v599
    %v602 = vpop.permute.xlu0 %601
    %v604 = vadd.f32 %v593, %v602
    %v605 = vtanh.pop %v604
    %v606 = vld [vmem:[%s19] sm:$0x1]
    %v607 = vld [vmem:[%s19 + $0x1] sm:$0x1]
    %v608 = vlaneseq
    %v609 = vshrl.u32 %v608, 7
    %v610 = vlaneseq
    %v611 = vshrl.u32 %v610, 7
    %v612 = vsub.s32 0, %v611
    %v613 = vrot.slane %v606, %v612
    %vm614 = vcmp.eq.s32.totalorder %v609, %v613
    %v615 = vlaneseq
    %v616 = vshrl.u32 %v615, 7
    %v617 = vsub.s32 0, %v616
    %v618 = vrot.slane %v607, %v617
    %vm619 = vcmp.eq.s32.totalorder %v609, %v618
    %v620 = vsel %vm614, 1, 0
    %v621 = vcvt.s32.f32 %v620
    %v622 = vsel %vm619, 1, 0
    %v623 = vcvt.s32.f32 %v622
    %vm624 = vcmask 80896
    %v626 = vsel %vm624, %v621, 0
    %v629 = vsel %vm624, %v623, 0
    %631 = vmatprep.subr.mxu0 0.0
    %632 = vmatpush1.xpose.msra.mxu0 %v629
    %633 = vmatprep.subr.mxu0 0.0
    %634 = vmatpush1.xpose.msra.mxu0 0.0
    %635 = vmatprep.subr.mxu0 0.0
    %636 = vmatpush1.xpose.msra.mxu0 0.0
    %637 = vmatprep.subr.mxu0 0.0
    %638 = vmatpush1.xpose.msra.mxu0 0.0
    %639 = vmatprep.subr.mxu0 0.0
    %640 = vmatpush1.xpose.msra.mxu0 0.0
    %641 = vmatprep.subr.mxu0 0.0
    %642 = vmatpush1.xpose.msra.mxu0 0.0
    %643 = vmatprep.subr.mxu0 0.0
    %644 = vmatpush1.xpose.msra.mxu0 0.0
    %645 = vmatprep.subr.mxu0 0.0
    %646 = vmatpush1.xpose.msra.mxu0 0.0
    %647 = vmatprep.subr.mxu0 0.0
    %648 = vmatpush1.xpose.msra.mxu0 0.0
    %649 = vmatprep.subr.mxu0 0.0
    %650 = vmatpush1.xpose.msra.mxu0 0.0
    %651 = vmatprep.subr.mxu0 0.0
    %652 = vmatpush1.xpose.msra.mxu0 0.0
    %653 = vmatprep.subr.mxu0 0.0
    %654 = vmatpush1.xpose.msra.mxu0 0.0
    %655 = vmatprep.subr.mxu0 0.0
    %656 = vmatpush1.xpose.msra.mxu0 0.0
    %657 = vmatprep.subr.mxu0 0.0
    %658 = vmatpush1.xpose.msra.mxu0 0.0
    %659 = vmatprep.subr.mxu0 0.0
    %660 = vmatpush1.xpose.msra.mxu0 0.0
    %661 = vmatprep.subr.mxu0 0.0
    %662 = vmatpush1.xpose.msra.mxu0 0.0
    %663 = vmatprep.subr.mxu0 0.0
    %664 = vmatpush1.xpose.msra.mxu0 0.0
    %665 = vmatprep.subr.mxu0 0.0
    %666 = vmatpush1.xpose.msra.mxu0 0.0
    %667 = vmatprep.subr.mxu0 0.0
    %668 = vmatpush1.xpose.msra.mxu0 0.0
    %669 = vmatprep.subr.mxu0 0.0
    %670 = vmatpush1.xpose.msra.mxu0 0.0
    %671 = vmatprep.subr.mxu0 0.0
    %672 = vmatpush1.xpose.msra.mxu0 0.0
    %673 = vmatprep.subr.mxu0 0.0
    %674 = vmatpush1.xpose.msra.mxu0 0.0
    %675 = vmatprep.subr.mxu0 0.0
    %676 = vmatpush1.xpose.msra.mxu0 0.0
    %677 = vmatprep.subr.mxu0 0.0
    %678 = vmatpush1.xpose.msra.mxu0 0.0
    %679 = vmatprep.subr.mxu0 0.0
    %680 = vmatpush1.xpose.msra.mxu0 0.0
    %681 = vmatprep.subr.mxu0 0.0
    %682 = vmatpush1.xpose.msra.mxu0 0.0
    %683 = vmatprep.subr.mxu0 0.0
    %684 = vmatpush1.xpose.msra.mxu0 0.0
    %685 = vmatprep.subr.mxu0 0.0
    %686 = vmatpush1.xpose.msra.mxu0 0.0
    %687 = vmatprep.subr.mxu0 0.0
    %688 = vmatpush1.xpose.msra.mxu0 0.0
    %689 = vmatprep.subr.mxu0 0.0
    %690 = vmatpush1.xpose.msra.mxu0 0.0
    %691 = vmatprep.subr.mxu0 0.0
    %692 = vmatpush1.xpose.msra.mxu0 0.0
    %693 = vmatprep.subr.mxu0 0.0
    %694 = vmatpush1.xpose.msra.mxu0 0.0
    %695 = vmatprep.mubr.f32.mxu0 0.0
    %696 = vmatmul.mubr.f32.gmra.mrb[0].mxu0 %v626
    %v697 = vpop.f32.mrb[0].mxu0
    %v698 = vadd.f32 0.0, %v697
    %v699 = vpop.f32.mrb[0].mxu0
    %700 = vdwg.mxu0
    %vm701 = vcmp.gt.f32.partialorder %v698, 0.5
    %v702 = vsel %vm701, %v605, -1e+30
    %vm703 = vcmask 64512
    %v704 = vsel %vm703, %v702, -inf
    %705 = vmax.xlane.f32.xlu0 %v704
    %v706 = vpop.xlane.xlu0 %705
    %v707 = vsub.f32 %v702, %v706
    %v708 = vmul.f32 %v707, 1.442695
    %v709 = vpow.pop %v708
    %v710 = vsel %vm701, %v709, 0.0
    %v711 = vsel %vm703, %v710, 0.0
    %712 = vadd.xlane.f32.xlu0 %v711
    %v713 = vpop.xlane.xlu0 %712
    %vm714 = vcmp.gt.f32.partialorder %v713, 0.0
    %v715 = vsel %vm714, %v713, 1.0
    %v716 = vrcp.pop %v715
    %v717 = vmul.f32 %v710, %v716
    %v718 = vpack.c.bf16 %v717, %v717
    %v719 = vld [vmem:[%s29] sm:$0x1]
    %v721 = vlaneseq
    %v722 = vshrl.u32 %v721, 7
    %v723 = vsub.s32 0, %v722
    %v724 = vrot.slane %v719, %v723
    %v727 = vsel %vm703, %v718, 0
    %v729 = vsel %vm379, %v537, 0
    %731 = vmatprep.subr.bf16.mxu0 0
    %732 = vmatpush1.bf16.msra.mxu0 %v729
    %733 = vmatprep.subr.bf16.mxu0 0
    %734 = vmatpush1.bf16.msra.mxu0 0
    %735 = vmatprep.subr.bf16.mxu0 0
    %736 = vmatpush1.bf16.msra.mxu0 0
    %737 = vmatprep.subr.bf16.mxu0 0
    %738 = vmatpush1.bf16.msra.mxu0 0
    %739 = vmatprep.subr.bf16.mxu0 0
    %740 = vmatpush1.bf16.msra.mxu0 0
    %741 = vmatprep.subr.bf16.mxu0 0
    %742 = vmatpush1.bf16.msra.mxu0 0
    %743 = vmatprep.subr.bf16.mxu0 0
    %744 = vmatpush1.bf16.msra.mxu0 0
    %745 = vmatprep.subr.bf16.mxu0 0
    %746 = vmatpush1.bf16.msra.mxu0 0
    %747 = vmatprep.subr.bf16.mxu0 0
    %748 = vmatpush1.bf16.msra.mxu0 0
    %749 = vmatprep.subr.bf16.mxu0 0
    %750 = vmatpush1.bf16.msra.mxu0 0
    %751 = vmatprep.subr.bf16.mxu0 0
    %752 = vmatpush1.bf16.msra.mxu0 0
    %753 = vmatprep.subr.bf16.mxu0 0
    %754 = vmatpush1.bf16.msra.mxu0 0
    %755 = vmatprep.subr.bf16.mxu0 0
    %756 = vmatpush1.bf16.msra.mxu0 0
    %757 = vmatprep.subr.bf16.mxu0 0
    %758 = vmatpush1.bf16.msra.mxu0 0
    %759 = vmatprep.subr.bf16.mxu0 0
    %760 = vmatpush1.bf16.msra.mxu0 0
    %761 = vmatprep.subr.bf16.mxu0 0
    %762 = vmatpush1.bf16.msra.mxu0 0
    %763 = vmatprep.mubr.bf16.mxu0 0
    %764 = vmatmul.mubr.bf16.gmra.mrb[0].mxu0 %v727
    %v765 = vpop.f32.mrb[0].mxu0
    %v766 = vadd.f32 %v724, %v765
    %v767 = vpop.f32.mrb[0].mxu0
    %v768 = vpop.f32.mrb[0].mxu0
    %v769 = vpop.f32.mrb[0].mxu0
    %770 = vdwg.mxu0
    %v771 = vld [vmem:[%s33] sm:$0xf]
    %v772 = vld [vmem:[%s33 + $0x4] sm:$0xf]
    %v773 = vld [vmem:[%s33 + $0x8] sm:$0xf]
    %v774 = vld [vmem:[%s33 + $0xc] sm:$0xf]
    %v775 = vld [vmem:[%s35] sm:$0x1]
    %v777 = vlaneseq
    %v778 = vshrl.u32 %v777, 7
    %v779 = vsub.s32 0, %v778
    %v780 = vrot.slane %v775, %v779
    %v786 = vunpack.c.l.b16 %v771
    %v787 = vunpack.c.l.b16 %v772
    %v788 = vunpack.c.l.b16 %v773
    %v789 = vunpack.c.l.b16 %v774
    %v790 = vpack.c.b16 %v787, %v786
    %v791 = vpack.c.b16 %v789, %v788
    %794 = vmatprep.subr.bf16.mxu0 0
    %795 = vmatpush1.bf16.msra.mxu0 %v790
    %796 = vmatprep.subr.bf16.mxu0 0
    %797 = vmatpush1.bf16.msra.mxu0 %v791
    %798 = vmatprep.subr.bf16.mxu0 0
    %799 = vmatpush1.bf16.msra.mxu0 0
    %800 = vmatprep.subr.bf16.mxu0 0
    %801 = vmatpush1.bf16.msra.mxu0 0
    %802 = vmatprep.subr.bf16.mxu0 0
    %803 = vmatpush1.bf16.msra.mxu0 0
    %804 = vmatprep.subr.bf16.mxu0 0
    %805 = vmatpush1.bf16.msra.mxu0 0
    %806 = vmatprep.subr.bf16.mxu0 0
    %807 = vmatpush1.bf16.msra.mxu0 0
    %808 = vmatprep.subr.bf16.mxu0 0
    %809 = vmatpush1.bf16.msra.mxu0 0
    %810 = vmatprep.subr.bf16.mxu0 0
    %811 = vmatpush1.bf16.msra.mxu0 0
    %812 = vmatprep.subr.bf16.mxu0 0
    %813 = vmatpush1.bf16.msra.mxu0 0
    %814 = vmatprep.subr.bf16.mxu0 0
    %815 = vmatpush1.bf16.msra.mxu0 0
    %816 = vmatprep.subr.bf16.mxu0 0
    %817 = vmatpush1.bf16.msra.mxu0 0
    %818 = vmatprep.subr.bf16.mxu0 0
    %819 = vmatpush1.bf16.msra.mxu0 0
    %820 = vmatprep.subr.bf16.mxu0 0
    %821 = vmatpush1.bf16.msra.mxu0 0
    %822 = vmatprep.subr.bf16.mxu0 0
    %823 = vmatpush1.bf16.msra.mxu0 0
    %824 = vmatprep.subr.bf16.mxu0 0
    %825 = vmatpush1.bf16.msra.mxu0 0
    %826 = vmatprep.mubr.bf16.mxu0 0
    %827 = vmatmul.mubr.bf16.gmra.mrb[0].mxu0 %v450
    %v828 = vpop.f32.mrb[0].mxu0
    %v829 = vadd.f32 %v780, %v828
    %v830 = vpop.f32.mrb[0].mxu0
    %v831 = vpop.f32.mrb[0].mxu0
    %v832 = vpop.f32.mrb[0].mxu0
    %833 = vdwg.mxu0
    %v834 = vpack.c.bf16 %v421, %v418
    %v836 = vsel %vm448, %v834, 0
    %838 = vmatprep.subr.bf16.mxu0 0
    %839 = vmatpush1.bf16.msra.mxu0 %v790
    %840 = vmatprep.subr.bf16.mxu0 0
    %841 = vmatpush1.bf16.msra.mxu0 %v791
    %842 = vmatprep.subr.bf16.mxu0 0
    %843 = vmatpush1.bf16.msra.mxu0 0
    %844 = vmatprep.subr.bf16.mxu0 0
    %845 = vmatpush1.bf16.msra.mxu0 0
    %846 = vmatprep.subr.bf16.mxu0 0
    %847 = vmatpush1.bf16.msra.mxu0 0
    %848 = vmatprep.subr.bf16.mxu0 0
    %849 = vmatpush1.bf16.msra.mxu0 0
    %850 = vmatprep.subr.bf16.mxu0 0
    %851 = vmatpush1.bf16.msra.mxu0 0
    %852 = vmatprep.subr.bf16.mxu0 0
    %853 = vmatpush1.bf16.msra.mxu0 0
    %854 = vmatprep.subr.bf16.mxu0 0
    %855 = vmatpush1.bf16.msra.mxu0 0
    %856 = vmatprep.subr.bf16.mxu0 0
    %857 = vmatpush1.bf16.msra.mxu0 0
    %858 = vmatprep.subr.bf16.mxu0 0
    %859 = vmatpush1.bf16.msra.mxu0 0
    %860 = vmatprep.subr.bf16.mxu0 0
    %861 = vmatpush1.bf16.msra.mxu0 0
    %862 = vmatprep.subr.bf16.mxu0 0
    %863 = vmatpush1.bf16.msra.mxu0 0
    %864 = vmatprep.subr.bf16.mxu0 0
    %865 = vmatpush1.bf16.msra.mxu0 0
    %866 = vmatprep.subr.bf16.mxu0 0
    %867 = vmatpush1.bf16.msra.mxu0 0
    %868 = vmatprep.subr.bf16.mxu0 0
    %869 = vmatpush1.bf16.msra.mxu0 0
    %870 = vmatprep.mubr.bf16.mxu0 0
    %871 = vmatmul.mubr.bf16.gmra.mrb[0].mxu0 %v836
    %v872 = vpop.f32.mrb[0].mxu0
    %v873 = vadd.f32 %v780, %v872
    %v874 = vpop.f32.mrb[0].mxu0
    %v875 = vpop.f32.mrb[0].mxu0
    %v876 = vadd.f32 %v780, %v875
    %v877 = vpop.f32.mrb[0].mxu0
    %878 = vdwg.mxu0
    %v879 = vld [vmem:[%s37] sm:$0x1]
    %v880 = vpack.c.bf16 %v876, %v873
    %v882 = vsel %vm448, %v879, 0
    %v885 = vsel %vm448, %v880, 0
    %887 = vmatprep.subr.bf16.mxu0 0
    %888 = vmatpush1.bf16.xpose.msra.mxu0 %v885
    %889 = vmatprep.subr.bf16.mxu0 0
    %890 = vmatpush1.bf16.xpose.msra.mxu0 0
    %891 = vmatprep.subr.bf16.mxu0 0
    %892 = vmatpush1.bf16.xpose.msra.mxu0 0
    %893 = vmatprep.subr.bf16.mxu0 0
    %894 = vmatpush1.bf16.xpose.msra.mxu0 0
    %895 = vmatprep.subr.bf16.mxu0 0
    %896 = vmatpush1.bf16.xpose.msra.mxu0 0
    %897 = vmatprep.subr.bf16.mxu0 0
    %898 = vmatpush1.bf16.xpose.msra.mxu0 0
    %899 = vmatprep.subr.bf16.mxu0 0
    %900 = vmatpush1.bf16.xpose.msra.mxu0 0
    %901 = vmatprep.subr.bf16.mxu0 0
    %902 = vmatpush1.bf16.xpose.msra.mxu0 0
    %903 = vmatprep.subr.bf16.mxu0 0
    %904 = vmatpush1.bf16.xpose.msra.mxu0 0
    %905 = vmatprep.subr.bf16.mxu0 0
    %906 = vmatpush1.bf16.xpose.msra.mxu0 0
    %907 = vmatprep.subr.bf16.mxu0 0
    %908 = vmatpush1.bf16.xpose.msra.mxu0 0
    %909 = vmatprep.subr.bf16.mxu0 0
    %910 = vmatpush1.bf16.xpose.msra.mxu0 0
    %911 = vmatprep.subr.bf16.mxu0 0
    %912 = vmatpush1.bf16.xpose.msra.mxu0 0
    %913 = vmatprep.subr.bf16.mxu0 0
    %914 = vmatpush1.bf16.xpose.msra.mxu0 0
    %915 = vmatprep.subr.bf16.mxu0 0
    %916 = vmatpush1.bf16.xpose.msra.mxu0 0
    %917 = vmatprep.subr.bf16.mxu0 0
    %918 = vmatpush1.bf16.xpose.msra.mxu0 0
    %919 = vmatprep.mubr.bf16.mxu0 0
    %920 = vmatmul.mubr.bf16.gmra.mrb[0].mxu0 %v882
    %v921 = vpop.f32.mrb[0].mxu0
    %v922 = vadd.f32 0.0, %v921
    %v923 = vpop.f32.mrb[0].mxu0
    %v924 = vpop.f32.mrb[0].mxu0
    %v925 = vpop.f32.mrb[0].mxu0
    %926 = vdwg.mxu0
    %928 = vset.pattern.permute.xlu0 32
    %929 = vperm.xlu0 %928, %v829
    %v930 = vpop.permute.xlu0 %929
    %v932 = vlaneseq
    %v933 = vshrl.u32 %v932, 7
    %v934 = vsub.s32 0, %v933
    %v935 = vrot.slane %v922, %v934
    %v936 = vadd.f32 %v930, %v935
    %v937 = vld [vmem:[#allocation3] sm:$0x1]
    %v939 = vlaneseq
    %v940 = vshrl.u32 %v939, 7
    %v941 = vsub.s32 0, %v940
    %v942 = vrot.slane %v937, %v941
    %943 = vset.pattern.permute.xlu0 0
    %944 = vperm.xlu0 %943, %v942
    %v945 = vpop.permute.xlu0 %944
    %v947 = vadd.f32 %v936, %v945
    %v948 = vtanh.pop %v947
    %v949 = vld [vmem:[%s31] sm:$0x1]
    %v950 = vld [vmem:[%s31 + $0x1] sm:$0x1]
    %v951 = vlaneseq
    %v952 = vshrl.u32 %v951, 7
    %v953 = vsub.s32 0, %v952
    %v954 = vrot.slane %v949, %v953
    %vm955 = vcmp.eq.s32.totalorder %v609, %v954
    %v956 = vadd.s32 %v609, 8
    %v957 = vlaneseq
    %v958 = vshrl.u32 %v957, 7
    %v959 = vsub.s32 0, %v958
    %v960 = vrot.slane %v950, %v959
    %vm961 = vcmp.eq.s32.totalorder %v609, %v960
    %vm962 = vcmp.eq.s32.totalorder %v956, %v960
    %v963 = vsel %vm955, 1, 0
    %v964 = vcvt.s32.f32 %v963
    %v965 = vsel %vm961, 1, 0
    %v966 = vsel %vm962, 1, 0
    %v967 = vcvt.s32.f32 %v965
    %v968 = vcvt.s32.f32 %v966
    %vm969 = vcmask 97280
    %v971 = vsel %vm969, %v964, 0
    %v974 = vsel %vm969, %v967, 0
    %v977 = vsel %vm969, %v968, 0
    %979 = vmatprep.subr.mxu0 0.0
    %980 = vmatpush1.xpose.msra.mxu0 %v974
    %981 = vmatprep.subr.mxu0 0.0
    %982 = vmatpush1.xpose.msra.mxu0 %v977
    %983 = vmatprep.subr.mxu0 0.0
    %984 = vmatpush1.xpose.msra.mxu0 0.0
    %985 = vmatprep.subr.mxu0 0.0
    %986 = vmatpush1.xpose.msra.mxu0 0.0
    %987 = vmatprep.subr.mxu0 0.0
    %988 = vmatpush1.xpose.msra.mxu0 0.0
    %989 = vmatprep.subr.mxu0 0.0
    %990 = vmatpush1.xpose.msra.mxu0 0.0
    %991 = vmatprep.subr.mxu0 0.0
    %992 = vmatpush1.xpose.msra.mxu0 0.0
    %993 = vmatprep.subr.mxu0 0.0
    %994 = vmatpush1.xpose.msra.mxu0 0.0
    %995 = vmatprep.subr.mxu0 0.0
    %996 = vmatpush1.xpose.msra.mxu0 0.0
    %997 = vmatprep.subr.mxu0 0.0
    %998 = vmatpush1.xpose.msra.mxu0 0.0
    %999 = vmatprep.subr.mxu0 0.0
    %1000 = vmatpush1.xpose.msra.mxu0 0.0
    %1001 = vmatprep.subr.mxu0 0.0
    %1002 = vmatpush1.xpose.msra.mxu0 0.0
    %1003 = vmatprep.subr.mxu0 0.0
    %1004 = vmatpush1.xpose.msra.mxu0 0.0
    %1005 = vmatprep.subr.mxu0 0.0
    %1006 = vmatpush1.xpose.msra.mxu0 0.0
    %1007 = vmatprep.subr.mxu0 0.0
    %1008 = vmatpush1.xpose.msra.mxu0 0.0
    %1009 = vmatprep.subr.mxu0 0.0
    %1010 = vmatpush1.xpose.msra.mxu0 0.0
    %1011 = vmatprep.subr.mxu0 0.0
    %1012 = vmatpush1.xpose.msra.mxu0 0.0
    %1013 = vmatprep.subr.mxu0 0.0
    %1014 = vmatpush1.xpose.msra.mxu0 0.0
    %1015 = vmatprep.subr.mxu0 0.0
    %1016 = vmatpush1.xpose.msra.mxu0 0.0
    %1017 = vmatprep.subr.mxu0 0.0
    %1018 = vmatpush1.xpose.msra.mxu0 0.0
    %1019 = vmatprep.subr.mxu0 0.0
    %1020 = vmatpush1.xpose.msra.mxu0 0.0
    %1021 = vmatprep.subr.mxu0 0.0
    %1022 = vmatpush1.xpose.msra.mxu0 0.0
    %1023 = vmatprep.subr.mxu0 0.0
    %1024 = vmatpush1.xpose.msra.mxu0 0.0
    %1025 = vmatprep.subr.mxu0 0.0
    %1026 = vmatpush1.xpose.msra.mxu0 0.0
    %1027 = vmatprep.subr.mxu0 0.0
    %1028 = vmatpush1.xpose.msra.mxu0 0.0
    %1029 = vmatprep.subr.mxu0 0.0
    %1030 = vmatpush1.xpose.msra.mxu0 0.0
    %1031 = vmatprep.subr.mxu0 0.0
    %1032 = vmatpush1.xpose.msra.mxu0 0.0
    %1033 = vmatprep.subr.mxu0 0.0
    %1034 = vmatpush1.xpose.msra.mxu0 0.0
    %1035 = vmatprep.subr.mxu0 0.0
    %1036 = vmatpush1.xpose.msra.mxu0 0.0
    %1037 = vmatprep.subr.mxu0 0.0
    %1038 = vmatpush1.xpose.msra.mxu0 0.0
    %1039 = vmatprep.subr.mxu0 0.0
    %1040 = vmatpush1.xpose.msra.mxu0 0.0
    %1041 = vmatprep.subr.mxu0 0.0
    %1042 = vmatpush1.xpose.msra.mxu0 0.0
    %1043 = vmatprep.mubr.f32.mxu0 0.0
    %1044 = vmatmul.mubr.f32.gmra.mrb[0].mxu0 %v971
    %v1045 = vpop.f32.mrb[0].mxu0
    %v1046 = vadd.f32 0.0, %v1045
    %v1047 = vpop.f32.mrb[0].mxu0
    %1048 = vdwg.mxu0
    %vm1049 = vcmp.gt.f32.partialorder %v1046, 0.5
    %v1050 = vsel %vm1049, %v948, -1e+30
    %v1051 = vsel %vm969, %v1050, -inf
    %1052 = vmax.xlane.f32.xlu0 %v1051
    %v1053 = vpop.xlane.xlu0 %1052
    %v1054 = vsub.f32 %v1050, %v1053
    %v1055 = vmul.f32 %v1054, 1.442695
    %v1056 = vpow.pop %v1055
    %v1057 = vsel %vm1049, %v1056, 0.0
    %v1058 = vsel %vm969, %v1057, 0.0
    %1059 = vadd.xlane.f32.xlu0 %v1058
    %v1060 = vpop.xlane.xlu0 %1059
    %vm1061 = vcmp.gt.f32.partialorder %v1060, 0.0
    %v1062 = vsel %vm1061, %v1060, 1.0
    %v1063 = vrcp.pop %v1062
    %v1064 = vmul.f32 %v1057, %v1063
    %v1065 = vpack.c.bf16 %v1064, %v1064
    %v1066 = vld [vmem:[%s41] sm:$0x1]
    %v1068 = vlaneseq
    %v1069 = vshrl.u32 %v1068, 7
    %v1070 = vsub.s32 0, %v1069
    %v1071 = vrot.slane %v1066, %v1070
    %v1074 = vsel %vm969, %v1065, 0
    %vm1076 = vcmask 1045504
    %v1077 = vsel %vm1076, %v880, 0
    %1079 = vmatprep.subr.bf16.mxu0 0
    %1080 = vmatpush1.bf16.msra.mxu0 %v1077
    %1081 = vmatprep.subr.bf16.mxu0 0
    %1082 = vmatpush1.bf16.msra.mxu0 0
    %1083 = vmatprep.subr.bf16.mxu0 0
    %1084 = vmatpush1.bf16.msra.mxu0 0
    %1085 = vmatprep.subr.bf16.mxu0 0
    %1086 = vmatpush1.bf16.msra.mxu0 0
    %1087 = vmatprep.subr.bf16.mxu0 0
    %1088 = vmatpush1.bf16.msra.mxu0 0
    %1089 = vmatprep.subr.bf16.mxu0 0
    %1090 = vmatpush1.bf16.msra.mxu0 0
    %1091 = vmatprep.subr.bf16.mxu0 0
    %1092 = vmatpush1.bf16.msra.mxu0 0
    %1093 = vmatprep.subr.bf16.mxu0 0
    %1094 = vmatpush1.bf16.msra.mxu0 0
    %1095 = vmatprep.subr.bf16.mxu0 0
    %1096 = vmatpush1.bf16.msra.mxu0 0
    %1097 = vmatprep.subr.bf16.mxu0 0
    %1098 = vmatpush1.bf16.msra.mxu0 0
    %1099 = vmatprep.subr.bf16.mxu0 0
    %1100 = vmatpush1.bf16.msra.mxu0 0
    %1101 = vmatprep.subr.bf16.mxu0 0
    %1102 = vmatpush1.bf16.msra.mxu0 0
    %1103 = vmatprep.subr.bf16.mxu0 0
    %1104 = vmatpush1.bf16.msra.mxu0 0
    %1105 = vmatprep.subr.bf16.mxu0 0
    %1106 = vmatpush1.bf16.msra.mxu0 0
    %1107 = vmatprep.subr.bf16.mxu0 0
    %1108 = vmatpush1.bf16.msra.mxu0 0
    %1109 = vmatprep.subr.bf16.mxu0 0
    %1110 = vmatpush1.bf16.msra.mxu0 0
    %1111 = vmatprep.mubr.bf16.mxu0 0
    %1112 = vmatmul.mubr.bf16.gmra.mrb[0].mxu0 %v1074
    %v1113 = vpop.f32.mrb[0].mxu0
    %v1114 = vadd.f32 %v1071, %v1113
    %v1115 = vpop.f32.mrb[0].mxu0
    %v1116 = vpop.f32.mrb[0].mxu0
    %v1117 = vpop.f32.mrb[0].mxu0
    %1118 = vdwg.mxu0
    %1120 = vrot.lane.b32.xlu0 %v766, 32
    %v1121 = vpop.permute.xlu0 %1120
    %1124 = vrot.lane.b32.xlu0 %v1114, 64
    %v1125 = vpop.permute.xlu0 %1124
    %v1127 = vsel %vm448, %v288, %v1121
    %vm1128 = vcmask 523264
    %v1129 = vsel %vm1128, %v1127, %v1125
    %v1130 = vld [vmem:[%s43] sm:$0xf]
    %v1131 = vld [vmem:[%s43 + $0x4] sm:$0xf]
    %v1132 = vld [vmem:[%s43 + $0x8] sm:$0xf]
    %v1133 = vld [vmem:[%s43 + $0xc] sm:$0xf]
    %v1134 = vld [vmem:[%s43 + $0x10] sm:$0xf]
    %v1135 = vld [vmem:[%s43 + $0x14] sm:$0xf]
    %v1136 = vld [vmem:[%s43 + $0x18] sm:$0xf]
    %v1137 = vld [vmem:[%s43 + $0x1c] sm:$0xf]
    %v1138 = vld [vmem:[%s43 + $0x20] sm:$0xf]
    %v1139 = vld [vmem:[%s43 + $0x24] sm:$0xf]
    %v1140 = vld [vmem:[%s43 + $0x28] sm:$0xf]
    %v1141 = vld [vmem:[%s43 + $0x2c] sm:$0xf]
    %v1142 = vpack.c.bf16 %v1129, %v1129
    %v1143 = vld [vmem:[#allocation4] sm:$0x1]
    %v1145 = vlaneseq
    %v1146 = vshrl.u32 %v1145, 7
    %v1147 = vsub.s32 0, %v1146
    %v1148 = vrot.slane %v1143, %v1147
    %1149 = vset.pattern.permute.xlu0 0
    %1150 = vperm.xlu0 %1149, %v1148
    %v1151 = vpop.permute.xlu0 %1150
    %v1165 = vunpack.c.l.b16 %v1130
    %v1166 = vunpack.c.l.b16 %v1131
    %v1167 = vunpack.c.l.b16 %v1132
    %v1168 = vunpack.c.l.b16 %v1133
    %v1169 = vunpack.c.l.b16 %v1134
    %v1170 = vunpack.c.l.b16 %v1135
    %v1171 = vunpack.c.l.b16 %v1136
    %v1172 = vunpack.c.l.b16 %v1137
    %v1173 = vunpack.c.l.b16 %v1138
    %v1174 = vunpack.c.l.b16 %v1139
    %v1175 = vunpack.c.l.b16 %v1140
    %v1176 = vunpack.c.l.b16 %v1141
    %v1177 = vpack.c.b16 %v1166, %v1165
    %v1178 = vpack.c.b16 %v1168, %v1167
    %v1179 = vpack.c.b16 %v1170, %v1169
    %v1180 = vpack.c.b16 %v1172, %v1171
    %v1181 = vpack.c.b16 %v1174, %v1173
    %v1182 = vpack.c.b16 %v1176, %v1175
    %vm1189 = vcmask 785408
    %v1191 = vsel %vm1189, %v1142, 0
    %1193 = vmatprep.subr.bf16.mxu0 0
    %1194 = vmatpush1.bf16.msra.mxu0 %v1177
    %1195 = vmatprep.subr.bf16.mxu0 0
    %1196 = vmatpush1.bf16.msra.mxu0 %v1178
    %1197 = vmatprep.subr.bf16.mxu0 0
    %1198 = vmatpush1.bf16.msra.mxu0 %v1179
    %1199 = vmatprep.subr.bf16.mxu0 0
    %1200 = vmatpush1.bf16.msra.mxu0 %v1180
    %1201 = vmatprep.subr.bf16.mxu0 0
    %1202 = vmatpush1.bf16.msra.mxu0 %v1181
    %1203 = vmatprep.subr.bf16.mxu0 0
    %1204 = vmatpush1.bf16.msra.mxu0 %v1182
    %1205 = vmatprep.subr.bf16.mxu0 0
    %1206 = vmatpush1.bf16.msra.mxu0 0
    %1207 = vmatprep.subr.bf16.mxu0 0
    %1208 = vmatpush1.bf16.msra.mxu0 0
    %1209 = vmatprep.subr.bf16.mxu0 0
    %1210 = vmatpush1.bf16.msra.mxu0 0
    %1211 = vmatprep.subr.bf16.mxu0 0
    %1212 = vmatpush1.bf16.msra.mxu0 0
    %1213 = vmatprep.subr.bf16.mxu0 0
    %1214 = vmatpush1.bf16.msra.mxu0 0
    %1215 = vmatprep.subr.bf16.mxu0 0
    %1216 = vmatpush1.bf16.msra.mxu0 0
    %1217 = vmatprep.subr.bf16.mxu0 0
    %1218 = vmatpush1.bf16.msra.mxu0 0
    %1219 = vmatprep.subr.bf16.mxu0 0
    %1220 = vmatpush1.bf16.msra.mxu0 0
    %1221 = vmatprep.subr.bf16.mxu0 0
    %1222 = vmatpush1.bf16.msra.mxu0 0
    %1223 = vmatprep.subr.bf16.mxu0 0
    %1224 = vmatpush1.bf16.msra.mxu0 0
    %1225 = vmatprep.mubr.bf16.mxu0 0
    %1226 = vmatmul.mubr.bf16.gmra.mrb[0].mxu0 %v1191
    %v1227 = vpop.f32.mrb[0].mxu0
    %v1228 = vadd.f32 %v1151, %v1227
    %v1229 = vpop.f32.mrb[0].mxu0
    %v1230 = vpop.f32.mrb[0].mxu0
    %v1231 = vpop.f32.mrb[0].mxu0
    %1232 = vdwg.mxu0
    %vm1233 = vcmp.ge.f32.partialorder %v1228, 0.0
    %v1234 = vmul.f32 %v1228, 0.01
    %v1235 = vsel %vm1233, %v1228, %v1234
    %vm1236 = vcmask 23552
    %v1237 = vsel %vm1236, %v1235, -inf
    %1238 = vmax.xlane.f32.xlu0 %v1237
    %v1239 = vpop.xlane.xlu0 %1238
    %v1240 = vsub.f32 %v1235, %v1239
    %v1241 = vmul.f32 %v1240, 1.442695
    %v1242 = vpow.pop %v1241
    %v1243 = vsel %vm1236, %v1242, 0.0
    %1244 = vadd.xlane.f32.xlu0 %v1243
    %v1245 = vpop.xlane.xlu0 %1244
    %v1246 = vrcp.pop %v1245
    %v1247 = vmul.f32 %v1242, %v1246
    %1249 = vset.pattern.permute.xlu0 0
    %1250 = vperm.xlu0 %1249, %v1247
    %v1251 = vpop.permute.xlu0 %1250
    %v1253 = vmul.f32 %v1251, %v288
    %v1254 = vadd.f32 %v1253, 0.0
    %1255 = vset.pattern.permute.xlu0 1
    %1256 = vperm.xlu0 %1255, %v1247
    %v1257 = vpop.permute.xlu0 %1256
    %v1259 = vmul.f32 %v1257, %v766
    %v1260 = vadd.f32 %v1254, %v1259
    %1261 = vset.pattern.permute.xlu0 2
    %1262 = vperm.xlu0 %1261, %v1247
    %v1263 = vpop.permute.xlu0 %1262
    %v1265 = vmul.f32 %v1263, %v1114
    %v1266 = vadd.f32 %v1260, %v1265
    %v1267 = vld [vmem:[%s47] sm:$0xf]
    %v1268 = vld [vmem:[%s47 + $0x4] sm:$0xf]
    %v1269 = vld [vmem:[%s47 + $0x8] sm:$0xf]
    %v1270 = vld [vmem:[%s47 + $0xc] sm:$0xf]
    %v1271 = vpack.c.bf16 %v1266, %v1266
    %v1272 = vld [vmem:[%s49] sm:$0x1]
    %v1274 = vlaneseq
    %v1275 = vshrl.u32 %v1274, 7
    %v1276 = vsub.s32 0, %v1275
    %v1277 = vrot.slane %v1272, %v1276
    %v1283 = vunpack.c.l.b16 %v1267
    %v1284 = vunpack.c.l.b16 %v1268
    %v1285 = vunpack.c.l.b16 %v1269
    %v1286 = vunpack.c.l.b16 %v1270
    %v1287 = vpack.c.b16 %v1284, %v1283
    %v1288 = vpack.c.b16 %v1286, %v1285
    %v1292 = vsel %vm448, %v1271, 0
    %1294 = vmatprep.subr.bf16.mxu0 0
    %1295 = vmatpush1.bf16.msra.mxu0 %v1287
    %1296 = vmatprep.subr.bf16.mxu0 0
    %1297 = vmatpush1.bf16.msra.mxu0 %v1288
    %1298 = vmatprep.subr.bf16.mxu0 0
    %1299 = vmatpush1.bf16.msra.mxu0 0
    %1300 = vmatprep.subr.bf16.mxu0 0
    %1301 = vmatpush1.bf16.msra.mxu0 0
    %1302 = vmatprep.subr.bf16.mxu0 0
    %1303 = vmatpush1.bf16.msra.mxu0 0
    %1304 = vmatprep.subr.bf16.mxu0 0
    %1305 = vmatpush1.bf16.msra.mxu0 0
    %1306 = vmatprep.subr.bf16.mxu0 0
    %1307 = vmatpush1.bf16.msra.mxu0 0
    %1308 = vmatprep.subr.bf16.mxu0 0
    %1309 = vmatpush1.bf16.msra.mxu0 0
    %1310 = vmatprep.subr.bf16.mxu0 0
    %1311 = vmatpush1.bf16.msra.mxu0 0
    %1312 = vmatprep.subr.bf16.mxu0 0
    %1313 = vmatpush1.bf16.msra.mxu0 0
    %1314 = vmatprep.subr.bf16.mxu0 0
    %1315 = vmatpush1.bf16.msra.mxu0 0
    %1316 = vmatprep.subr.bf16.mxu0 0
    %1317 = vmatpush1.bf16.msra.mxu0 0
    %1318 = vmatprep.subr.bf16.mxu0 0
    %1319 = vmatpush1.bf16.msra.mxu0 0
    %1320 = vmatprep.subr.bf16.mxu0 0
    %1321 = vmatpush1.bf16.msra.mxu0 0
    %1322 = vmatprep.subr.bf16.mxu0 0
    %1323 = vmatpush1.bf16.msra.mxu0 0
    %1324 = vmatprep.subr.bf16.mxu0 0
    %1325 = vmatpush1.bf16.msra.mxu0 0
    %1326 = vmatprep.mubr.bf16.mxu0 0
    %1327 = vmatmul.mubr.bf16.gmra.mrb[0].mxu0 %v1292
    %v1328 = vpop.f32.mrb[0].mxu0
    %v1329 = vadd.f32 %v1277, %v1328
    %v1330 = vpop.f32.mrb[0].mxu0
    %v1331 = vpop.f32.mrb[0].mxu0
    %v1332 = vpop.f32.mrb[0].mxu0
    %1333 = vdwg.mxu0
    %v1334 = vld [vmem:[%s51] sm:$0xf]
    %v1335 = vld [vmem:[%s51 + $0x4] sm:$0xf]
    %v1336 = vld [vmem:[%s51 + $0x8] sm:$0xf]
    %v1337 = vld [vmem:[%s51 + $0xc] sm:$0xf]
    %v1338 = vpack.c.bf16 %v1329, %v1329
    %v1339 = vld [vmem:[%s53] sm:$0x1]
    %v1341 = vlaneseq
    %v1342 = vshrl.u32 %v1341, 7
    %v1343 = vsub.s32 0, %v1342
    %v1344 = vrot.slane %v1339, %v1343
    %v1350 = vunpack.c.l.b16 %v1334
    %v1351 = vunpack.c.l.b16 %v1335
    %v1352 = vunpack.c.l.b16 %v1336
    %v1353 = vunpack.c.l.b16 %v1337
    %v1354 = vpack.c.b16 %v1351, %v1350
    %v1355 = vpack.c.b16 %v1353, %v1352
    %v1359 = vsel %vm448, %v1338, 0
    %1361 = vmatprep.subr.bf16.mxu0 0
    %1362 = vmatpush1.bf16.msra.mxu0 %v1354
    %1363 = vmatprep.subr.bf16.mxu0 0
    %1364 = vmatpush1.bf16.msra.mxu0 %v1355
    %1365 = vmatprep.subr.bf16.mxu0 0
    %1366 = vmatpush1.bf16.msra.mxu0 0
    %1367 = vmatprep.subr.bf16.mxu0 0
    %1368 = vmatpush1.bf16.msra.mxu0 0
    %1369 = vmatprep.subr.bf16.mxu0 0
    %1370 = vmatpush1.bf16.msra.mxu0 0
    %1371 = vmatprep.subr.bf16.mxu0 0
    %1372 = vmatpush1.bf16.msra.mxu0 0
    %1373 = vmatprep.subr.bf16.mxu0 0
    %1374 = vmatpush1.bf16.msra.mxu0 0
    %1375 = vmatprep.subr.bf16.mxu0 0
    %1376 = vmatpush1.bf16.msra.mxu0 0
    %1377 = vmatprep.subr.bf16.mxu0 0
    %1378 = vmatpush1.bf16.msra.mxu0 0
    %1379 = vmatprep.subr.bf16.mxu0 0
    %1380 = vmatpush1.bf16.msra.mxu0 0
    %1381 = vmatprep.subr.bf16.mxu0 0
    %1382 = vmatpush1.bf16.msra.mxu0 0
    %1383 = vmatprep.subr.bf16.mxu0 0
    %1384 = vmatpush1.bf16.msra.mxu0 0
    %1385 = vmatprep.subr.bf16.mxu0 0
    %1386 = vmatpush1.bf16.msra.mxu0 0
    %1387 = vmatprep.subr.bf16.mxu0 0
    %1388 = vmatpush1.bf16.msra.mxu0 0
    %1389 = vmatprep.subr.bf16.mxu0 0
    %1390 = vmatpush1.bf16.msra.mxu0 0
    %1391 = vmatprep.subr.bf16.mxu0 0
    %1392 = vmatpush1.bf16.msra.mxu0 0
    %1393 = vmatprep.mubr.bf16.mxu0 0
    %1394 = vmatmul.mubr.bf16.gmra.mrb[0].mxu0 %v1359
    %v1395 = vpop.f32.mrb[0].mxu0
    %v1396 = vadd.f32 %v1344, %v1395
    %v1397 = vpop.f32.mrb[0].mxu0
    %v1398 = vpop.f32.mrb[0].mxu0
    %v1399 = vpop.f32.mrb[0].mxu0
    %1400 = vdwg.mxu0
    %v1401 = vtanh.pop %v1396
    %v1402 = vld [vmem:[%s55] sm:$0x1]
    %v1403 = vld [vmem:[%s57] sm:$0x1]
    %v1404 = vsel %vm448, %v1401, 0.0
    %1405 = vadd.xlane.f32.xlu0 %v1404
    %v1406 = vpop.xlane.xlu0 %1405
    %v1407 = vrcp.pop 32.0
    %v1408 = vmul.f32 %v1406, %v1407
    %v1409 = vsub.f32 %v1401, %v1408
    %v1410 = vmul.f32 %v1409, %v1409
    %v1411 = vsel %vm448, %v1410, 0.0
    %1412 = vadd.xlane.f32.xlu0 %v1411
    %v1413 = vpop.xlane.xlu0 %1412
    %v1414 = vmul.f32 %v1413, %v1407
    %v1415 = vadd.f32 %v1414, 1e-05
    %v1416 = vrsqrt.pop %v1415
    %v1417 = vmul.f32 %v1409, %v1416
    %v1419 = vlaneseq
    %v1420 = vshrl.u32 %v1419, 7
    %v1421 = vsub.s32 0, %v1420
    %v1422 = vrot.slane %v1402, %v1421
    %v1424 = vmul.f32 %v1417, %v1422
    %v1426 = vlaneseq
    %v1427 = vshrl.u32 %v1426, 7
    %v1428 = vsub.s32 0, %v1427
    %v1429 = vrot.slane %v1403, %v1428
    %v1431 = vadd.f32 %v1424, %v1429
    %s1432 = scalar_lea.vmem %s51, 16
    %v1433 = vld [vmem:[%s1432] sm:$0xf]
    %v1434 = vld [vmem:[%s1432 + $0x4] sm:$0xf]
    %v1435 = vld [vmem:[%s1432 + $0x8] sm:$0xf]
    %v1436 = vld [vmem:[%s1432 + $0xc] sm:$0xf]
    %v1437 = vpack.c.bf16 %v1431, %v1431
    %s1438 = scalar_lea.vmem %s53, 1
    %v1439 = vld [vmem:[%s1438] sm:$0x1]
    %v1441 = vlaneseq
    %v1442 = vshrl.u32 %v1441, 7
    %v1443 = vsub.s32 0, %v1442
    %v1444 = vrot.slane %v1439, %v1443
    %v1450 = vunpack.c.l.b16 %v1433
    %v1451 = vunpack.c.l.b16 %v1434
    %v1452 = vunpack.c.l.b16 %v1435
    %v1453 = vunpack.c.l.b16 %v1436
    %v1454 = vpack.c.b16 %v1451, %v1450
    %v1455 = vpack.c.b16 %v1453, %v1452
    %v1459 = vsel %vm448, %v1437, 0
    %1461 = vmatprep.subr.bf16.mxu0 0
    %1462 = vmatpush1.bf16.msra.mxu0 %v1454
    %1463 = vmatprep.subr.bf16.mxu0 0
    %1464 = vmatpush1.bf16.msra.mxu0 %v1455
    %1465 = vmatprep.subr.bf16.mxu0 0
    %1466 = vmatpush1.bf16.msra.mxu0 0
    %1467 = vmatprep.subr.bf16.mxu0 0
    %1468 = vmatpush1.bf16.msra.mxu0 0
    %1469 = vmatprep.subr.bf16.mxu0 0
    %1470 = vmatpush1.bf16.msra.mxu0 0
    %1471 = vmatprep.subr.bf16.mxu0 0
    %1472 = vmatpush1.bf16.msra.mxu0 0
    %1473 = vmatprep.subr.bf16.mxu0 0
    %1474 = vmatpush1.bf16.msra.mxu0 0
    %1475 = vmatprep.subr.bf16.mxu0 0
    %1476 = vmatpush1.bf16.msra.mxu0 0
    %1477 = vmatprep.subr.bf16.mxu0 0
    %1478 = vmatpush1.bf16.msra.mxu0 0
    %1479 = vmatprep.subr.bf16.mxu0 0
    %1480 = vmatpush1.bf16.msra.mxu0 0
    %1481 = vmatprep.subr.bf16.mxu0 0
    %1482 = vmatpush1.bf16.msra.mxu0 0
    %1483 = vmatprep.subr.bf16.mxu0 0
    %1484 = vmatpush1.bf16.msra.mxu0 0
    %1485 = vmatprep.subr.bf16.mxu0 0
    %1486 = vmatpush1.bf16.msra.mxu0 0
    %1487 = vmatprep.subr.bf16.mxu0 0
    %1488 = vmatpush1.bf16.msra.mxu0 0
    %1489 = vmatprep.subr.bf16.mxu0 0
    %1490 = vmatpush1.bf16.msra.mxu0 0
    %1491 = vmatprep.subr.bf16.mxu0 0
    %1492 = vmatpush1.bf16.msra.mxu0 0
    %1493 = vmatprep.mubr.bf16.mxu0 0
    %1494 = vmatmul.mubr.bf16.gmra.mrb[0].mxu0 %v1459
    %v1495 = vpop.f32.mrb[0].mxu0
    %v1496 = vadd.f32 %v1444, %v1495
    %v1497 = vpop.f32.mrb[0].mxu0
    %v1498 = vpop.f32.mrb[0].mxu0
    %v1499 = vpop.f32.mrb[0].mxu0
    %1500 = vdwg.mxu0
    %v1501 = vtanh.pop %v1496
    %s1502 = scalar_lea.vmem %s55, 1
    %v1503 = vld [vmem:[%s1502] sm:$0x1]
    %s1504 = scalar_lea.vmem %s57, 1
    %v1505 = vld [vmem:[%s1504] sm:$0x1]
    %v1506 = vsel %vm448, %v1501, 0.0
    %1507 = vadd.xlane.f32.xlu0 %v1506
    %v1508 = vpop.xlane.xlu0 %1507
    %v1509 = vmul.f32 %v1508, %v1407
    %v1510 = vsub.f32 %v1501, %v1509
    %v1511 = vmul.f32 %v1510, %v1510
    %v1512 = vsel %vm448, %v1511, 0.0
    %1513 = vadd.xlane.f32.xlu0 %v1512
    %v1514 = vpop.xlane.xlu0 %1513
    %v1515 = vmul.f32 %v1514, %v1407
    %v1516 = vadd.f32 %v1515, 1e-05
    %v1517 = vrsqrt.pop %v1516
    %v1518 = vmul.f32 %v1510, %v1517
    %v1520 = vlaneseq
    %v1521 = vshrl.u32 %v1520, 7
    %v1522 = vsub.s32 0, %v1521
    %v1523 = vrot.slane %v1503, %v1522
    %v1525 = vmul.f32 %v1518, %v1523
    %v1527 = vlaneseq
    %v1528 = vshrl.u32 %v1527, 7
    %v1529 = vsub.s32 0, %v1528
    %v1530 = vrot.slane %v1505, %v1529
    %v1532 = vadd.f32 %v1525, %v1530
    %v1533 = vadd.f32 %v1329, %v1532
    %v1534 = vtanh.pop %v1533
    %v1535 = vld [vmem:[%s59] sm:$0x1]
    %v1536 = vld [vmem:[%s61] sm:$0x1]
    %v1537 = vsel %vm448, %v1534, 0.0
    %1538 = vadd.xlane.f32.xlu0 %v1537
    %v1539 = vpop.xlane.xlu0 %1538
    %v1540 = vmul.f32 %v1539, %v1407
    %v1541 = vsub.f32 %v1534, %v1540
    %v1542 = vmul.f32 %v1541, %v1541
    %v1543 = vsel %vm448, %v1542, 0.0
    %1544 = vadd.xlane.f32.xlu0 %v1543
    %v1545 = vpop.xlane.xlu0 %1544
    %v1546 = vmul.f32 %v1545, %v1407
    %v1547 = vadd.f32 %v1546, 1e-05
    %v1548 = vrsqrt.pop %v1547
    %v1549 = vmul.f32 %v1541, %v1548
    %v1551 = vlaneseq
    %v1552 = vshrl.u32 %v1551, 7
    %v1553 = vsub.s32 0, %v1552
    %v1554 = vrot.slane %v1535, %v1553
    %v1556 = vmul.f32 %v1549, %v1554
    %v1558 = vlaneseq
    %v1559 = vshrl.u32 %v1558, 7
    %v1560 = vsub.s32 0, %v1559
    %v1561 = vrot.slane %v1536, %v1560
    %v1563 = vadd.f32 %v1556, %v1561
    %v1564 = vld [vmem:[%s63] sm:$0xf]
    %v1565 = vld [vmem:[%s63 + $0x4] sm:$0xf]
    %v1566 = vld [vmem:[%s63 + $0x8] sm:$0xf]
    %v1567 = vld [vmem:[%s63 + $0xc] sm:$0xf]
    %v1568 = vpack.c.bf16 %v1563, %v1563
    %v1569 = vld [vmem:[#allocation5] sm:$0x1]
    %v1571 = vlaneseq
    %v1572 = vshrl.u32 %v1571, 7
    %v1573 = vsub.s32 0, %v1572
    %v1574 = vrot.slane %v1569, %v1573
    %v1580 = vunpack.c.l.b16 %v1564
    %v1581 = vunpack.c.l.b16 %v1565
    %v1582 = vunpack.c.l.b16 %v1566
    %v1583 = vunpack.c.l.b16 %v1567
    %v1584 = vpack.c.b16 %v1581, %v1580
    %v1585 = vpack.c.b16 %v1583, %v1582
    %v1589 = vsel %vm448, %v1568, 0
    %1591 = vmatprep.subr.bf16.mxu0 0
    %1592 = vmatpush1.bf16.msra.mxu0 %v1584
    %1593 = vmatprep.subr.bf16.mxu0 0
    %1594 = vmatpush1.bf16.msra.mxu0 %v1585
    %1595 = vmatprep.subr.bf16.mxu0 0
    %1596 = vmatpush1.bf16.msra.mxu0 0
    %1597 = vmatprep.subr.bf16.mxu0 0
    %1598 = vmatpush1.bf16.msra.mxu0 0
    %1599 = vmatprep.subr.bf16.mxu0 0
    %1600 = vmatpush1.bf16.msra.mxu0 0
    %1601 = vmatprep.subr.bf16.mxu0 0
    %1602 = vmatpush1.bf16.msra.mxu0 0
    %1603 = vmatprep.subr.bf16.mxu0 0
    %1604 = vmatpush1.bf16.msra.mxu0 0
    %1605 = vmatprep.subr.bf16.mxu0 0
    %1606 = vmatpush1.bf16.msra.mxu0 0
    %1607 = vmatprep.subr.bf16.mxu0 0
    %1608 = vmatpush1.bf16.msra.mxu0 0
    %1609 = vmatprep.subr.bf16.mxu0 0
    %1610 = vmatpush1.bf16.msra.mxu0 0
    %1611 = vmatprep.subr.bf16.mxu0 0
    %1612 = vmatpush1.bf16.msra.mxu0 0
    %1613 = vmatprep.subr.bf16.mxu0 0
    %1614 = vmatpush1.bf16.msra.mxu0 0
    %1615 = vmatprep.subr.bf16.mxu0 0
    %1616 = vmatpush1.bf16.msra.mxu0 0
    %1617 = vmatprep.subr.bf16.mxu0 0
    %1618 = vmatpush1.bf16.msra.mxu0 0
    %1619 = vmatprep.subr.bf16.mxu0 0
    %1620 = vmatpush1.bf16.msra.mxu0 0
    %1621 = vmatprep.subr.bf16.mxu0 0
    %1622 = vmatpush1.bf16.msra.mxu0 0
    %1623 = vmatprep.mubr.bf16.mxu0 0
    %1624 = vmatmul.mubr.bf16.gmra.mrb[0].mxu0 %v1589
    %v1625 = vpop.f32.mrb[0].mxu0
    %v1626 = vadd.f32 %v1574, %v1625
    %v1627 = vpop.f32.mrb[0].mxu0
    %v1628 = vpop.f32.mrb[0].mxu0
    %v1629 = vpop.f32.mrb[0].mxu0
    %1630 = vdwg.mxu0
    %v1631 = vsub.f32 0.0, %v1626
    %v1632 = vmul.f32 %v1631, 1.442695
    %v1633 = vpow.pop %v1632
    %v1634 = vadd.f32 %v1633, 1.0
    %v1635 = vrcp.pop %v1634
    %v1636 = vmul.f32 1.0, %v1635
    %vm1637 = vcmask 7168
    %1638 = vst.msk [vmem:[%s67] sm:$0xff] %vm1637, %v1636
    // Predicated region
    $region162: #{tpu_custom_call.1} parent=1 // pred_check
      _
    $region163: #{tpu_custom_call.1} parent=1 // pred_check_branch
      %1640 = sbr.rel (0) target = $region165
    $region164: #{tpu_custom_call.1} parent=1 // pred_region
      _
    $region165: #{tpu_custom_call.1} parent=1 // pred_fallthru
      _
    // Predicated region
    $region166: #{tpu_custom_call.1} parent=1 // pred_check
      _
    $region167: #{tpu_custom_call.1} parent=1 // pred_check_branch
      %1642 = sbr.rel (0) target = $region169
    $region168: #{tpu_custom_call.1} parent=1 // pred_region
      _
    $region169: #{tpu_custom_call.1} parent=1 // pred_fallthru
      _
    %1643 = vsyncpa [#allocation7], 1
    %1644 = vsyncpa [#allocation9], 1
    %1645 = vsyncpa [#allocation12], 1
    %1646 = vsyncpa [#allocation15], 1

</llo_original>
